<compile_context>
chip_gen: v5e
topology: v5e:2x2
jax: 0.10.0
libtpu: 0.0.40
codegen_flags: <defaults>
</compile_context>

<pallas_src>
import functools
import math

import jax
import jax.numpy as jnp
from jax.experimental import pallas as pl
from jax.experimental.pallas import tpu as pltpu


# ----------------------------- kernel ----------------------------------------


def _mha_fused_kernel(x_ref, wqkv_ref, bqkv_ref, wfc_ref, bfc_ref, o_ref,
                      *, num_heads, dh, seq_len, batch_tile):
    """One grid step: QKV projection for all Bt batch rows + per-(batch, head)
    attention accumulated directly into the fc output, stored lane-dense."""
    head_dim = num_heads * dh

    # Single MXU push for Q/K/V of all heads and all Bt*S rows (bf16 operands,
    # f32 accumulation).  1/sqrt(d_k) is pre-folded into the q columns / bias.
    qkv = jnp.dot(x_ref[...], wqkv_ref[...],
                  preferred_element_type=jnp.float32) + bqkv_ref[...]

    q_all = qkv[:, 0:head_dim]                       # [Bt*S, head_dim] (pre-scaled)
    k_all = qkv[:, head_dim:2 * head_dim]
    v_all = qkv[:, 2 * head_dim:3 * head_dim]

    slabs = []
    for b in range(batch_tile):                      # tiny, fully unrolled
        r0 = b * seq_len
        # out_b = bfc + sum_h (P_h @ V_h) @ Wfc[h*dh:(h+1)*dh, :]
        # -> no per-head concat, one live f32 accumulator.
        acc = jnp.zeros((seq_len, head_dim), jnp.float32)
        for h in range(num_heads):
            c0 = h * dh
            q = q_all[r0:r0 + seq_len, c0:c0 + dh].astype(jnp.bfloat16)
            k = k_all[r0:r0 + seq_len, c0:c0 + dh].astype(jnp.bfloat16)
            v = v_all[r0:r0 + seq_len, c0:c0 + dh].astype(jnp.bfloat16)

            # scores[i, j] = q[i] . k[j]  (contract last axes; no explicit k.T).
            # TODO(synk): at realistic Sk, check the MLIR for a per-step XLU
            # transpose of k; if present, emit K as [dh, Sk] from the QKV proj.
            s = jax.lax.dot_general(q, k, (((1,), (1,)), ((), ())),
                                    preferred_element_type=jnp.float32)

            # softmax over the QUERY axis (torch F.softmax(dim=1) of [B,Sq,Sk]);
            # keep max/exp/sum/normalize in f32 (v5e has no bf16 VPU/EUP).
            m = jnp.max(s, axis=0, keepdims=True)
            e = jnp.exp(s - m)
            p = e * pl.reciprocal(jnp.sum(e, axis=0, keepdims=True), approx=False)

            pv = jnp.dot(p.astype(jnp.bfloat16), v,
                         preferred_element_type=jnp.float32)            # [S, dh]
            acc = acc + jnp.dot(pv.astype(jnp.bfloat16), wfc_ref[h],
                                preferred_element_type=jnp.float32)     # [S, head_dim]

        out_b = acc + bfc_ref[...]                   # [S, head_dim] f32

        # Build the lane-dense slab row [1, S*head_dim] (== 128 lanes here) so
        # the final store is an unmasked full-lane vst instead of 16-lane vst.msk.
        slabs.append(jnp.concatenate(
            [out_b[i:i + 1, :] for i in range(seq_len)], axis=1))

    o_ref[...] = jnp.concatenate(slabs, axis=0)      # one [Bt, S*head_dim] store


# ----------------------------- parameter prep (one-time) ----------------------


def prepare_params(params):
    """Hoisted out of the forward call: stack per-head Q/K/V weights into one
    lane-dense [H, 3*head_dim] matrix, fold 1/sqrt(d_k) into the Q projection,
    pre-cast MXU weights to bf16, and split Wfc into per-head row blocks."""
    wq, bq, wk, bk, wv, bv, wfc, bfc = (
        params["wq"], params["bq"], params["wk"], params["bk"],
        params["wv"], params["bv"], params["wfc"], params["bfc"],
    )
    num_heads, H, dh = wq.shape
    head_dim = num_heads * dh
    inv_sqrt_dk = 1.0 / math.sqrt(dh)                # d_k = key.shape[-1] = dh

    def stack_w(w):                                  # [nh, H, dh] -> [H, nh*dh]
        return jnp.transpose(w, (1, 0, 2)).reshape(H, head_dim)

    def stack_b(b):                                  # [nh, 1, dh] -> [1, nh*dh]
        return b.reshape(1, head_dim)

    wqkv = jnp.concatenate(
        [stack_w(wq) * inv_sqrt_dk, stack_w(wk), stack_w(wv)],
        axis=1).astype(jnp.bfloat16)
    bqkv = jnp.concatenate(
        [stack_b(bq) * inv_sqrt_dk, stack_b(bk), stack_b(bv)],
        axis=1).astype(jnp.float32)

    return {
        "wqkv": wqkv,                                            # [H, 3*hd] bf16
        "bqkv": bqkv,                                            # [1, 3*hd] f32
        "wfc": wfc.astype(jnp.bfloat16).reshape(num_heads, dh, head_dim),
        "bfc": bfc.reshape(1, head_dim).astype(jnp.float32),
        "num_heads": num_heads, "dh": dh, "hidden_dim": H,
    }


# ----------------------------- wrapper ----------------------------------------


def multi_head_attention(hidden, prepped, *, batch_tile=None):
    """hidden: [B, S, H] float32.  Returns [B, S, head_dim] float32."""
    B, S, H = hidden.shape
    num_heads, dh = prepped["num_heads"], prepped["dh"]
    head_dim = num_heads * dh

    # Fold the whole (tiny) batch into one grid step's matmul rows.
    # TODO(synk): at realistic sizes keep >=2 'parallel' blocks so v7x's second
    # TensorCore is used, and add Sq/N/K grid axes (tiles multiples of 256 on
    # v6e/v7x, 128 on v5e) with an f32 accumulator + explicit vmem_limit_bytes;
    # stream over Sk (softmax is over queries -> Sk tiles need no renorm).
    if batch_tile is None:
        batch_tile = B
    assert B % batch_tile == 0
    num_blocks = B // batch_tile

    x2d = hidden.reshape(B * S, H).astype(jnp.bfloat16)   # batch folded into rows

    kernel = functools.partial(_mha_fused_kernel, num_heads=num_heads, dh=dh,
                               seq_len=S, batch_tile=batch_tile)

    out_slab = pl.pallas_call(
        kernel,
        out_shape=jax.ShapeDtypeStruct((B, S * head_dim), jnp.float32),
        grid=(num_blocks,),
        in_specs=[
            pl.BlockSpec((batch_tile * S, H), lambda i: (i, 0)),           # x (bf16)
            pl.BlockSpec((H, 3 * head_dim), lambda i: (0, 0)),             # W_qkv
            pl.BlockSpec((1, 3 * head_dim), lambda i: (0, 0)),             # b_qkv
            pl.BlockSpec((num_heads, dh, head_dim), lambda i: (0, 0, 0)),  # W_fc blocks
            pl.BlockSpec((1, head_dim), lambda i: (0, 0)),                 # b_fc
        ],
        out_specs=pl.BlockSpec((batch_tile, S * head_dim), lambda i: (i, 0)),
        compiler_params=pltpu.CompilerParams(
            dimension_semantics=("parallel",)),
    )(x2d, prepped["wqkv"], prepped["bqkv"], prepped["wfc"], prepped["bfc"])

    # Reshape the lane-dense slab back to [B, S, head_dim] outside the kernel.
    return out_slab.reshape(B, S, head_dim)


# ----------------------------- reference (plain JAX, f32) ---------------------


def _reference(hidden, params):
    wq, bq, wk, bk, wv, bv, wfc, bfc = (
        params["wq"], params["bq"], params["wk"], params["bk"],
        params["wv"], params["bv"], params["wfc"], params["bfc"],
    )
    num_heads = wq.shape[0]
    outs = []
    for h in range(num_heads):
        q = hidden @ wq[h] + bq[h]
        k = hidden @ wk[h] + bk[h]
        v = hidden @ wv[h] + bv[h]
        s = (q @ jnp.swapaxes(k, 1, 2)) / math.sqrt(k.shape[-1])
        p = jax.nn.softmax(s, axis=1)                # torch F.softmax(dim=1)
        outs.append(p @ v)
    att = jnp.concatenate(outs, axis=-1)
    return att @ wfc + bfc


# ----------------------------- main --------------------------------------------


if __name__ == "__main__":
    # Small, module-consistent shapes.
    B, S = 2, 8
    hidden_dim = 32
    head_dim = 16
    num_heads = 4
    dh = head_dim // num_heads                       # scaled_head_dim = 4

    key = jax.random.PRNGKey(0)
    ks = jax.random.split(key, 9)

    params = {
        "wq": 0.1 * jax.random.normal(ks[0], (num_heads, hidden_dim, dh), jnp.float32),
        "bq": 0.1 * jax.random.normal(ks[1], (num_heads, 1, dh), jnp.float32),
        "wk": 0.1 * jax.random.normal(ks[2], (num_heads, hidden_dim, dh), jnp.float32),
        "bk": 0.1 * jax.random.normal(ks[3], (num_heads, 1, dh), jnp.float32),
        "wv": 0.1 * jax.random.normal(ks[4], (num_heads, hidden_dim, dh), jnp.float32),
        "bv": 0.1 * jax.random.normal(ks[5], (num_heads, 1, dh), jnp.float32),
        "wfc": 0.1 * jax.random.normal(ks[6], (head_dim, head_dim), jnp.float32),
        "bfc": 0.1 * jax.random.normal(ks[7], (1, head_dim), jnp.float32),
    }
    hidden = jax.random.normal(ks[8], (B, S, hidden_dim), jnp.float32)

    prepped = prepare_params(params)                 # one-time weight prep
    out = multi_head_attention(hidden, prepped)
    out = jax.block_until_ready(out)

    ref = _reference(hidden, params)
    assert out.shape == (B, S, head_dim), out.shape
    # bf16 MXU operands -> relaxed tolerance vs. the pure-f32 reference.
    max_err = float(jnp.max(jnp.abs(out - ref)))
    assert jnp.allclose(out, ref, atol=5e-2, rtol=5e-2), max_err

    print("KERNEL_OK")
</pallas_src>

<mosaic_0001>
module attributes {stable_mosaic.version = 11 : i64} {
  func.func @_mha_fused_kernel(%arg0: i32, %arg1: memref<16x32xbf16, #tpu.memory_space<vmem>>, %arg2: memref<32x48xbf16, #tpu.memory_space<vmem>>, %arg3: memref<1x48xf32, #tpu.memory_space<vmem>>, %arg4: memref<4x4x16xbf16, #tpu.memory_space<vmem>>, %arg5: memref<1x16xf32, #tpu.memory_space<vmem>>, %arg6: memref<2x128xf32, #tpu.memory_space<vmem>>) attributes {dimension_semantics = [#tpu.dimension_semantics<parallel>], iteration_bounds = array<i64: 1>, scalar_prefetch = 0 : i64, scratch_operands = 0 : i64, tpu.core_type = #tpu.core_type<tc>, window_params = [{transform_indices = @transform_0, window_bounds = array<i64: 16, 32>}, {pipeline_mode = #tpu.pipeline_mode<synchronous>, transform_indices = @transform_1, window_bounds = array<i64: 32, 48>}, {pipeline_mode = #tpu.pipeline_mode<synchronous>, transform_indices = @transform_2, window_bounds = array<i64: 1, 48>}, {pipeline_mode = #tpu.pipeline_mode<synchronous>, transform_indices = @transform_3, window_bounds = array<i64: 4, 4, 16>}, {pipeline_mode = #tpu.pipeline_mode<synchronous>, transform_indices = @transform_4, window_bounds = array<i64: 1, 16>}, {transform_indices = @transform_5, window_bounds = array<i64: 2, 128>}]} {
    %c0 = arith.constant 0 : index
    %c0_0 = arith.constant 0 : index
    %0 = vector.load %arg1[%c0, %c0_0] : memref<16x32xbf16, #tpu.memory_space<vmem>>, vector<16x32xbf16>
    %c0_1 = arith.constant 0 : index
    %c0_2 = arith.constant 0 : index
    %1 = vector.load %arg2[%c0_1, %c0_2] : memref<32x48xbf16, #tpu.memory_space<vmem>>, vector<32x48xbf16>
    %cst = arith.constant dense<0.000000e+00> : vector<16x48xf32>
    %2 = tpu.matmul %0, %1, %cst {dimension_numbers = #tpu.dot_dimension_numbers<[1], [0], [0], [1], [0, 0, 1, 1], [], []>} : vector<16x32xbf16>, vector<32x48xbf16>, vector<16x48xf32> -> vector<16x48xf32>
    %c0_3 = arith.constant 0 : index
    %c0_4 = arith.constant 0 : index
    %3 = vector.load %arg3[%c0_3, %c0_4] : memref<1x48xf32, #tpu.memory_space<vmem>>, vector<1x48xf32>
    %4 = vector.broadcast %3 : vector<1x48xf32> to vector<16x48xf32>
    %5 = arith.addf %2, %4 : vector<16x48xf32>
    %6 = vector.extract_strided_slice %5 {offsets = [0, 0], sizes = [16, 16], strides = [1, 1]} : vector<16x48xf32> to vector<16x16xf32>
    %7 = vector.extract_strided_slice %5 {offsets = [0, 16], sizes = [16, 16], strides = [1, 1]} : vector<16x48xf32> to vector<16x16xf32>
    %8 = vector.extract_strided_slice %5 {offsets = [0, 32], sizes = [16, 16], strides = [1, 1]} : vector<16x48xf32> to vector<16x16xf32>
    %cst_5 = arith.constant 0.000000e+00 : f32
    %9 = vector.broadcast %cst_5 : f32 to vector<8x16xf32>
    %10 = vector.extract_strided_slice %6 {offsets = [0, 0], sizes = [8, 4], strides = [1, 1]} : vector<16x16xf32> to vector<8x4xf32>
    %11 = arith.truncf %10 : vector<8x4xf32> to vector<8x4xbf16>
    %12 = vector.extract_strided_slice %7 {offsets = [0, 0], sizes = [8, 4], strides = [1, 1]} : vector<16x16xf32> to vector<8x4xf32>
    %13 = arith.truncf %12 : vector<8x4xf32> to vector<8x4xbf16>
    %14 = vector.extract_strided_slice %8 {offsets = [0, 0], sizes = [8, 4], strides = [1, 1]} : vector<16x16xf32> to vector<8x4xf32>
    %15 = arith.truncf %14 : vector<8x4xf32> to vector<8x4xbf16>
    %cst_6 = arith.constant dense<0.000000e+00> : vector<8x8xf32>
    %16 = tpu.matmul %11, %13, %cst_6 {dimension_numbers = #tpu.dot_dimension_numbers<[1], [1], [0], [0], [0, 0, 1, 0], [], []>} : vector<8x4xbf16>, vector<8x4xbf16>, vector<8x8xf32> -> vector<8x8xf32>
    %cst_7 = arith.constant dense<0xFF800000> : vector<8xf32>
    %17 = vector.multi_reduction <maximumf>, %16, %cst_7 [0] : vector<8x8xf32> to vector<8xf32>
    %18 = vector.shape_cast %17 : vector<8xf32> to vector<1x8xf32>
    %19 = vector.broadcast %18 : vector<1x8xf32> to vector<8x8xf32>
    %20 = arith.subf %16, %19 : vector<8x8xf32>
    %21 = math.exp %20 : vector<8x8xf32>
    %cst_8 = arith.constant dense<0.000000e+00> : vector<8xf32>
    %22 = vector.multi_reduction <add>, %21, %cst_8 [0] : vector<8x8xf32> to vector<8xf32>
    %23 = vector.shape_cast %22 : vector<8xf32> to vector<1x8xf32>
    %24 = tpu.reciprocal %23 : vector<1x8xf32> -> vector<1x8xf32>
    %25 = vector.broadcast %24 : vector<1x8xf32> to vector<8x8xf32>
    %26 = arith.mulf %21, %25 : vector<8x8xf32>
    %27 = arith.truncf %26 : vector<8x8xf32> to vector<8x8xbf16>
    %cst_9 = arith.constant dense<0.000000e+00> : vector<8x4xf32>
    %28 = tpu.matmul %27, %15, %cst_9 {dimension_numbers = #tpu.dot_dimension_numbers<[1], [0], [0], [1], [0, 0, 1, 1], [], []>} : vector<8x8xbf16>, vector<8x4xbf16>, vector<8x4xf32> -> vector<8x4xf32>
    %29 = arith.truncf %28 : vector<8x4xf32> to vector<8x4xbf16>
    %c0_10 = arith.constant 0 : index
    %c0_11 = arith.constant 0 : index
    %c0_12 = arith.constant 0 : index
    %30 = vector.load %arg4[%c0_10, %c0_11, %c0_12] : memref<4x4x16xbf16, #tpu.memory_space<vmem>>, vector<1x4x16xbf16>
    %31 = vector.shape_cast %30 : vector<1x4x16xbf16> to vector<4x16xbf16>
    %cst_13 = arith.constant dense<0.000000e+00> : vector<8x16xf32>
    %32 = tpu.matmul %29, %31, %cst_13 {dimension_numbers = #tpu.dot_dimension_numbers<[1], [0], [0], [1], [0, 0, 1, 1], [], []>} : vector<8x4xbf16>, vector<4x16xbf16>, vector<8x16xf32> -> vector<8x16xf32>
    %33 = arith.addf %9, %32 : vector<8x16xf32>
    %34 = vector.extract_strided_slice %6 {offsets = [0, 4], sizes = [8, 4], strides = [1, 1]} : vector<16x16xf32> to vector<8x4xf32>
    %35 = arith.truncf %34 : vector<8x4xf32> to vector<8x4xbf16>
    %36 = vector.extract_strided_slice %7 {offsets = [0, 4], sizes = [8, 4], strides = [1, 1]} : vector<16x16xf32> to vector<8x4xf32>
    %37 = arith.truncf %36 : vector<8x4xf32> to vector<8x4xbf16>
    %38 = vector.extract_strided_slice %8 {offsets = [0, 4], sizes = [8, 4], strides = [1, 1]} : vector<16x16xf32> to vector<8x4xf32>
    %39 = arith.truncf %38 : vector<8x4xf32> to vector<8x4xbf16>
    %cst_14 = arith.constant dense<0.000000e+00> : vector<8x8xf32>
    %40 = tpu.matmul %35, %37, %cst_14 {dimension_numbers = #tpu.dot_dimension_numbers<[1], [1], [0], [0], [0, 0, 1, 0], [], []>} : vector<8x4xbf16>, vector<8x4xbf16>, vector<8x8xf32> -> vector<8x8xf32>
    %cst_15 = arith.constant dense<0xFF800000> : vector<8xf32>
    %41 = vector.multi_reduction <maximumf>, %40, %cst_15 [0] : vector<8x8xf32> to vector<8xf32>
    %42 = vector.shape_cast %41 : vector<8xf32> to vector<1x8xf32>
    %43 = vector.broadcast %42 : vector<1x8xf32> to vector<8x8xf32>
    %44 = arith.subf %40, %43 : vector<8x8xf32>
    %45 = math.exp %44 : vector<8x8xf32>
    %cst_16 = arith.constant dense<0.000000e+00> : vector<8xf32>
    %46 = vector.multi_reduction <add>, %45, %cst_16 [0] : vector<8x8xf32> to vector<8xf32>
    %47 = vector.shape_cast %46 : vector<8xf32> to vector<1x8xf32>
    %48 = tpu.reciprocal %47 : vector<1x8xf32> -> vector<1x8xf32>
    %49 = vector.broadcast %48 : vector<1x8xf32> to vector<8x8xf32>
    %50 = arith.mulf %45, %49 : vector<8x8xf32>
    %51 = arith.truncf %50 : vector<8x8xf32> to vector<8x8xbf16>
    %cst_17 = arith.constant dense<0.000000e+00> : vector<8x4xf32>
    %52 = tpu.matmul %51, %39, %cst_17 {dimension_numbers = #tpu.dot_dimension_numbers<[1], [0], [0], [1], [0, 0, 1, 1], [], []>} : vector<8x8xbf16>, vector<8x4xbf16>, vector<8x4xf32> -> vector<8x4xf32>
    %53 = arith.truncf %52 : vector<8x4xf32> to vector<8x4xbf16>
    %c1 = arith.constant 1 : index
    %c0_18 = arith.constant 0 : index
    %c0_19 = arith.constant 0 : index
    %54 = vector.load %arg4[%c1, %c0_18, %c0_19] : memref<4x4x16xbf16, #tpu.memory_space<vmem>>, vector<1x4x16xbf16>
    %55 = vector.shape_cast %54 : vector<1x4x16xbf16> to vector<4x16xbf16>
    %cst_20 = arith.constant dense<0.000000e+00> : vector<8x16xf32>
    %56 = tpu.matmul %53, %55, %cst_20 {dimension_numbers = #tpu.dot_dimension_numbers<[1], [0], [0], [1], [0, 0, 1, 1], [], []>} : vector<8x4xbf16>, vector<4x16xbf16>, vector<8x16xf32> -> vector<8x16xf32>
    %57 = arith.addf %33, %56 : vector<8x16xf32>
    %58 = vector.extract_strided_slice %6 {offsets = [0, 8], sizes = [8, 4], strides = [1, 1]} : vector<16x16xf32> to vector<8x4xf32>
    %59 = arith.truncf %58 : vector<8x4xf32> to vector<8x4xbf16>
    %60 = vector.extract_strided_slice %7 {offsets = [0, 8], sizes = [8, 4], strides = [1, 1]} : vector<16x16xf32> to vector<8x4xf32>
    %61 = arith.truncf %60 : vector<8x4xf32> to vector<8x4xbf16>
    %62 = vector.extract_strided_slice %8 {offsets = [0, 8], sizes = [8, 4], strides = [1, 1]} : vector<16x16xf32> to vector<8x4xf32>
    %63 = arith.truncf %62 : vector<8x4xf32> to vector<8x4xbf16>
    %cst_21 = arith.constant dense<0.000000e+00> : vector<8x8xf32>
    %64 = tpu.matmul %59, %61, %cst_21 {dimension_numbers = #tpu.dot_dimension_numbers<[1], [1], [0], [0], [0, 0, 1, 0], [], []>} : vector<8x4xbf16>, vector<8x4xbf16>, vector<8x8xf32> -> vector<8x8xf32>
    %cst_22 = arith.constant dense<0xFF800000> : vector<8xf32>
    %65 = vector.multi_reduction <maximumf>, %64, %cst_22 [0] : vector<8x8xf32> to vector<8xf32>
    %66 = vector.shape_cast %65 : vector<8xf32> to vector<1x8xf32>
    %67 = vector.broadcast %66 : vector<1x8xf32> to vector<8x8xf32>
    %68 = arith.subf %64, %67 : vector<8x8xf32>
    %69 = math.exp %68 : vector<8x8xf32>
    %cst_23 = arith.constant dense<0.000000e+00> : vector<8xf32>
    %70 = vector.multi_reduction <add>, %69, %cst_23 [0] : vector<8x8xf32> to vector<8xf32>
    %71 = vector.shape_cast %70 : vector<8xf32> to vector<1x8xf32>
    %72 = tpu.reciprocal %71 : vector<1x8xf32> -> vector<1x8xf32>
    %73 = vector.broadcast %72 : vector<1x8xf32> to vector<8x8xf32>
    %74 = arith.mulf %69, %73 : vector<8x8xf32>
    %75 = arith.truncf %74 : vector<8x8xf32> to vector<8x8xbf16>
    %cst_24 = arith.constant dense<0.000000e+00> : vector<8x4xf32>
    %76 = tpu.matmul %75, %63, %cst_24 {dimension_numbers = #tpu.dot_dimension_numbers<[1], [0], [0], [1], [0, 0, 1, 1], [], []>} : vector<8x8xbf16>, vector<8x4xbf16>, vector<8x4xf32> -> vector<8x4xf32>
    %77 = arith.truncf %76 : vector<8x4xf32> to vector<8x4xbf16>
    %c2 = arith.constant 2 : index
    %c0_25 = arith.constant 0 : index
    %c0_26 = arith.constant 0 : index
    %78 = vector.load %arg4[%c2, %c0_25, %c0_26] : memref<4x4x16xbf16, #tpu.memory_space<vmem>>, vector<1x4x16xbf16>
    %79 = vector.shape_cast %78 : vector<1x4x16xbf16> to vector<4x16xbf16>
    %cst_27 = arith.constant dense<0.000000e+00> : vector<8x16xf32>
    %80 = tpu.matmul %77, %79, %cst_27 {dimension_numbers = #tpu.dot_dimension_numbers<[1], [0], [0], [1], [0, 0, 1, 1], [], []>} : vector<8x4xbf16>, vector<4x16xbf16>, vector<8x16xf32> -> vector<8x16xf32>
    %81 = arith.addf %57, %80 : vector<8x16xf32>
    %82 = vector.extract_strided_slice %6 {offsets = [0, 12], sizes = [8, 4], strides = [1, 1]} : vector<16x16xf32> to vector<8x4xf32>
    %83 = arith.truncf %82 : vector<8x4xf32> to vector<8x4xbf16>
    %84 = vector.extract_strided_slice %7 {offsets = [0, 12], sizes = [8, 4], strides = [1, 1]} : vector<16x16xf32> to vector<8x4xf32>
    %85 = arith.truncf %84 : vector<8x4xf32> to vector<8x4xbf16>
    %86 = vector.extract_strided_slice %8 {offsets = [0, 12], sizes = [8, 4], strides = [1, 1]} : vector<16x16xf32> to vector<8x4xf32>
    %87 = arith.truncf %86 : vector<8x4xf32> to vector<8x4xbf16>
    %cst_28 = arith.constant dense<0.000000e+00> : vector<8x8xf32>
    %88 = tpu.matmul %83, %85, %cst_28 {dimension_numbers = #tpu.dot_dimension_numbers<[1], [1], [0], [0], [0, 0, 1, 0], [], []>} : vector<8x4xbf16>, vector<8x4xbf16>, vector<8x8xf32> -> vector<8x8xf32>
    %cst_29 = arith.constant dense<0xFF800000> : vector<8xf32>
    %89 = vector.multi_reduction <maximumf>, %88, %cst_29 [0] : vector<8x8xf32> to vector<8xf32>
    %90 = vector.shape_cast %89 : vector<8xf32> to vector<1x8xf32>
    %91 = vector.broadcast %90 : vector<1x8xf32> to vector<8x8xf32>
    %92 = arith.subf %88, %91 : vector<8x8xf32>
    %93 = math.exp %92 : vector<8x8xf32>
    %cst_30 = arith.constant dense<0.000000e+00> : vector<8xf32>
    %94 = vector.multi_reduction <add>, %93, %cst_30 [0] : vector<8x8xf32> to vector<8xf32>
    %95 = vector.shape_cast %94 : vector<8xf32> to vector<1x8xf32>
    %96 = tpu.reciprocal %95 : vector<1x8xf32> -> vector<1x8xf32>
    %97 = vector.broadcast %96 : vector<1x8xf32> to vector<8x8xf32>
    %98 = arith.mulf %93, %97 : vector<8x8xf32>
    %99 = arith.truncf %98 : vector<8x8xf32> to vector<8x8xbf16>
    %cst_31 = arith.constant dense<0.000000e+00> : vector<8x4xf32>
    %100 = tpu.matmul %99, %87, %cst_31 {dimension_numbers = #tpu.dot_dimension_numbers<[1], [0], [0], [1], [0, 0, 1, 1], [], []>} : vector<8x8xbf16>, vector<8x4xbf16>, vector<8x4xf32> -> vector<8x4xf32>
    %101 = arith.truncf %100 : vector<8x4xf32> to vector<8x4xbf16>
    %c3 = arith.constant 3 : index
    %c0_32 = arith.constant 0 : index
    %c0_33 = arith.constant 0 : index
    %102 = vector.load %arg4[%c3, %c0_32, %c0_33] : memref<4x4x16xbf16, #tpu.memory_space<vmem>>, vector<1x4x16xbf16>
    %103 = vector.shape_cast %102 : vector<1x4x16xbf16> to vector<4x16xbf16>
    %cst_34 = arith.constant dense<0.000000e+00> : vector<8x16xf32>
    %104 = tpu.matmul %101, %103, %cst_34 {dimension_numbers = #tpu.dot_dimension_numbers<[1], [0], [0], [1], [0, 0, 1, 1], [], []>} : vector<8x4xbf16>, vector<4x16xbf16>, vector<8x16xf32> -> vector<8x16xf32>
    %105 = arith.addf %81, %104 : vector<8x16xf32>
    %c0_35 = arith.constant 0 : index
    %c0_36 = arith.constant 0 : index
    %106 = vector.load %arg5[%c0_35, %c0_36] : memref<1x16xf32, #tpu.memory_space<vmem>>, vector<1x16xf32>
    %107 = vector.broadcast %106 : vector<1x16xf32> to vector<8x16xf32>
    %108 = arith.addf %105, %107 : vector<8x16xf32>
    %109 = vector.extract_strided_slice %108 {offsets = [0, 0], sizes = [1, 16], strides = [1, 1]} : vector<8x16xf32> to vector<1x16xf32>
    %110 = vector.extract_strided_slice %108 {offsets = [1, 0], sizes = [1, 16], strides = [1, 1]} : vector<8x16xf32> to vector<1x16xf32>
    %111 = vector.extract_strided_slice %108 {offsets = [2, 0], sizes = [1, 16], strides = [1, 1]} : vector<8x16xf32> to vector<1x16xf32>
    %112 = vector.extract_strided_slice %108 {offsets = [3, 0], sizes = [1, 16], strides = [1, 1]} : vector<8x16xf32> to vector<1x16xf32>
    %113 = vector.extract_strided_slice %108 {offsets = [4, 0], sizes = [1, 16], strides = [1, 1]} : vector<8x16xf32> to vector<1x16xf32>
    %114 = vector.extract_strided_slice %108 {offsets = [5, 0], sizes = [1, 16], strides = [1, 1]} : vector<8x16xf32> to vector<1x16xf32>
    %115 = vector.extract_strided_slice %108 {offsets = [6, 0], sizes = [1, 16], strides = [1, 1]} : vector<8x16xf32> to vector<1x16xf32>
    %116 = vector.extract_strided_slice %108 {offsets = [7, 0], sizes = [1, 16], strides = [1, 1]} : vector<8x16xf32> to vector<1x16xf32>
    %117 = tpu.concatenate %109, %110, %111, %112, %113, %114, %115, %116 in 1 : vector<1x16xf32>, vector<1x16xf32>, vector<1x16xf32>, vector<1x16xf32>, vector<1x16xf32>, vector<1x16xf32>, vector<1x16xf32>, vector<1x16xf32> -> vector<1x128xf32>
    %cst_37 = arith.constant 0.000000e+00 : f32
    %118 = vector.broadcast %cst_37 : f32 to vector<8x16xf32>
    %119 = vector.extract_strided_slice %6 {offsets = [8, 0], sizes = [8, 4], strides = [1, 1]} : vector<16x16xf32> to vector<8x4xf32>
    %120 = arith.truncf %119 : vector<8x4xf32> to vector<8x4xbf16>
    %121 = vector.extract_strided_slice %7 {offsets = [8, 0], sizes = [8, 4], strides = [1, 1]} : vector<16x16xf32> to vector<8x4xf32>
    %122 = arith.truncf %121 : vector<8x4xf32> to vector<8x4xbf16>
    %123 = vector.extract_strided_slice %8 {offsets = [8, 0], sizes = [8, 4], strides = [1, 1]} : vector<16x16xf32> to vector<8x4xf32>
    %124 = arith.truncf %123 : vector<8x4xf32> to vector<8x4xbf16>
    %cst_38 = arith.constant dense<0.000000e+00> : vector<8x8xf32>
    %125 = tpu.matmul %120, %122, %cst_38 {dimension_numbers = #tpu.dot_dimension_numbers<[1], [1], [0], [0], [0, 0, 1, 0], [], []>} : vector<8x4xbf16>, vector<8x4xbf16>, vector<8x8xf32> -> vector<8x8xf32>
    %cst_39 = arith.constant dense<0xFF800000> : vector<8xf32>
    %126 = vector.multi_reduction <maximumf>, %125, %cst_39 [0] : vector<8x8xf32> to vector<8xf32>
    %127 = vector.shape_cast %126 : vector<8xf32> to vector<1x8xf32>
    %128 = vector.broadcast %127 : vector<1x8xf32> to vector<8x8xf32>
    %129 = arith.subf %125, %128 : vector<8x8xf32>
    %130 = math.exp %129 : vector<8x8xf32>
    %cst_40 = arith.constant dense<0.000000e+00> : vector<8xf32>
    %131 = vector.multi_reduction <add>, %130, %cst_40 [0] : vector<8x8xf32> to vector<8xf32>
    %132 = vector.shape_cast %131 : vector<8xf32> to vector<1x8xf32>
    %133 = tpu.reciprocal %132 : vector<1x8xf32> -> vector<1x8xf32>
    %134 = vector.broadcast %133 : vector<1x8xf32> to vector<8x8xf32>
    %135 = arith.mulf %130, %134 : vector<8x8xf32>
    %136 = arith.truncf %135 : vector<8x8xf32> to vector<8x8xbf16>
    %cst_41 = arith.constant dense<0.000000e+00> : vector<8x4xf32>
    %137 = tpu.matmul %136, %124, %cst_41 {dimension_numbers = #tpu.dot_dimension_numbers<[1], [0], [0], [1], [0, 0, 1, 1], [], []>} : vector<8x8xbf16>, vector<8x4xbf16>, vector<8x4xf32> -> vector<8x4xf32>
    %138 = arith.truncf %137 : vector<8x4xf32> to vector<8x4xbf16>
    %c0_42 = arith.constant 0 : index
    %c0_43 = arith.constant 0 : index
    %c0_44 = arith.constant 0 : index
    %139 = vector.load %arg4[%c0_42, %c0_43, %c0_44] : memref<4x4x16xbf16, #tpu.memory_space<vmem>>, vector<1x4x16xbf16>
    %140 = vector.shape_cast %139 : vector<1x4x16xbf16> to vector<4x16xbf16>
    %cst_45 = arith.constant dense<0.000000e+00> : vector<8x16xf32>
    %141 = tpu.matmul %138, %140, %cst_45 {dimension_numbers = #tpu.dot_dimension_numbers<[1], [0], [0], [1], [0, 0, 1, 1], [], []>} : vector<8x4xbf16>, vector<4x16xbf16>, vector<8x16xf32> -> vector<8x16xf32>
    %142 = arith.addf %118, %141 : vector<8x16xf32>
    %143 = vector.extract_strided_slice %6 {offsets = [8, 4], sizes = [8, 4], strides = [1, 1]} : vector<16x16xf32> to vector<8x4xf32>
    %144 = arith.truncf %143 : vector<8x4xf32> to vector<8x4xbf16>
    %145 = vector.extract_strided_slice %7 {offsets = [8, 4], sizes = [8, 4], strides = [1, 1]} : vector<16x16xf32> to vector<8x4xf32>
    %146 = arith.truncf %145 : vector<8x4xf32> to vector<8x4xbf16>
    %147 = vector.extract_strided_slice %8 {offsets = [8, 4], sizes = [8, 4], strides = [1, 1]} : vector<16x16xf32> to vector<8x4xf32>
    %148 = arith.truncf %147 : vector<8x4xf32> to vector<8x4xbf16>
    %cst_46 = arith.constant dense<0.000000e+00> : vector<8x8xf32>
    %149 = tpu.matmul %144, %146, %cst_46 {dimension_numbers = #tpu.dot_dimension_numbers<[1], [1], [0], [0], [0, 0, 1, 0], [], []>} : vector<8x4xbf16>, vector<8x4xbf16>, vector<8x8xf32> -> vector<8x8xf32>
    %cst_47 = arith.constant dense<0xFF800000> : vector<8xf32>
    %150 = vector.multi_reduction <maximumf>, %149, %cst_47 [0] : vector<8x8xf32> to vector<8xf32>
    %151 = vector.shape_cast %150 : vector<8xf32> to vector<1x8xf32>
    %152 = vector.broadcast %151 : vector<1x8xf32> to vector<8x8xf32>
    %153 = arith.subf %149, %152 : vector<8x8xf32>
    %154 = math.exp %153 : vector<8x8xf32>
    %cst_48 = arith.constant dense<0.000000e+00> : vector<8xf32>
    %155 = vector.multi_reduction <add>, %154, %cst_48 [0] : vector<8x8xf32> to vector<8xf32>
    %156 = vector.shape_cast %155 : vector<8xf32> to vector<1x8xf32>
    %157 = tpu.reciprocal %156 : vector<1x8xf32> -> vector<1x8xf32>
    %158 = vector.broadcast %157 : vector<1x8xf32> to vector<8x8xf32>
    %159 = arith.mulf %154, %158 : vector<8x8xf32>
    %160 = arith.truncf %159 : vector<8x8xf32> to vector<8x8xbf16>
    %cst_49 = arith.constant dense<0.000000e+00> : vector<8x4xf32>
    %161 = tpu.matmul %160, %148, %cst_49 {dimension_numbers = #tpu.dot_dimension_numbers<[1], [0], [0], [1], [0, 0, 1, 1], [], []>} : vector<8x8xbf16>, vector<8x4xbf16>, vector<8x4xf32> -> vector<8x4xf32>
    %162 = arith.truncf %161 : vector<8x4xf32> to vector<8x4xbf16>
    %c1_50 = arith.constant 1 : index
    %c0_51 = arith.constant 0 : index
    %c0_52 = arith.constant 0 : index
    %163 = vector.load %arg4[%c1_50, %c0_51, %c0_52] : memref<4x4x16xbf16, #tpu.memory_space<vmem>>, vector<1x4x16xbf16>
    %164 = vector.shape_cast %163 : vector<1x4x16xbf16> to vector<4x16xbf16>
    %cst_53 = arith.constant dense<0.000000e+00> : vector<8x16xf32>
    %165 = tpu.matmul %162, %164, %cst_53 {dimension_numbers = #tpu.dot_dimension_numbers<[1], [0], [0], [1], [0, 0, 1, 1], [], []>} : vector<8x4xbf16>, vector<4x16xbf16>, vector<8x16xf32> -> vector<8x16xf32>
    %166 = arith.addf %142, %165 : vector<8x16xf32>
    %167 = vector.extract_strided_slice %6 {offsets = [8, 8], sizes = [8, 4], strides = [1, 1]} : vector<16x16xf32> to vector<8x4xf32>
    %168 = arith.truncf %167 : vector<8x4xf32> to vector<8x4xbf16>
    %169 = vector.extract_strided_slice %7 {offsets = [8, 8], sizes = [8, 4], strides = [1, 1]} : vector<16x16xf32> to vector<8x4xf32>
    %170 = arith.truncf %169 : vector<8x4xf32> to vector<8x4xbf16>
    %171 = vector.extract_strided_slice %8 {offsets = [8, 8], sizes = [8, 4], strides = [1, 1]} : vector<16x16xf32> to vector<8x4xf32>
    %172 = arith.truncf %171 : vector<8x4xf32> to vector<8x4xbf16>
    %cst_54 = arith.constant dense<0.000000e+00> : vector<8x8xf32>
    %173 = tpu.matmul %168, %170, %cst_54 {dimension_numbers = #tpu.dot_dimension_numbers<[1], [1], [0], [0], [0, 0, 1, 0], [], []>} : vector<8x4xbf16>, vector<8x4xbf16>, vector<8x8xf32> -> vector<8x8xf32>
    %cst_55 = arith.constant dense<0xFF800000> : vector<8xf32>
    %174 = vector.multi_reduction <maximumf>, %173, %cst_55 [0] : vector<8x8xf32> to vector<8xf32>
    %175 = vector.shape_cast %174 : vector<8xf32> to vector<1x8xf32>
    %176 = vector.broadcast %175 : vector<1x8xf32> to vector<8x8xf32>
    %177 = arith.subf %173, %176 : vector<8x8xf32>
    %178 = math.exp %177 : vector<8x8xf32>
    %cst_56 = arith.constant dense<0.000000e+00> : vector<8xf32>
    %179 = vector.multi_reduction <add>, %178, %cst_56 [0] : vector<8x8xf32> to vector<8xf32>
    %180 = vector.shape_cast %179 : vector<8xf32> to vector<1x8xf32>
    %181 = tpu.reciprocal %180 : vector<1x8xf32> -> vector<1x8xf32>
    %182 = vector.broadcast %181 : vector<1x8xf32> to vector<8x8xf32>
    %183 = arith.mulf %178, %182 : vector<8x8xf32>
    %184 = arith.truncf %183 : vector<8x8xf32> to vector<8x8xbf16>
    %cst_57 = arith.constant dense<0.000000e+00> : vector<8x4xf32>
    %185 = tpu.matmul %184, %172, %cst_57 {dimension_numbers = #tpu.dot_dimension_numbers<[1], [0], [0], [1], [0, 0, 1, 1], [], []>} : vector<8x8xbf16>, vector<8x4xbf16>, vector<8x4xf32> -> vector<8x4xf32>
    %186 = arith.truncf %185 : vector<8x4xf32> to vector<8x4xbf16>
    %c2_58 = arith.constant 2 : index
    %c0_59 = arith.constant 0 : index
    %c0_60 = arith.constant 0 : index
    %187 = vector.load %arg4[%c2_58, %c0_59, %c0_60] : memref<4x4x16xbf16, #tpu.memory_space<vmem>>, vector<1x4x16xbf16>
    %188 = vector.shape_cast %187 : vector<1x4x16xbf16> to vector<4x16xbf16>
    %cst_61 = arith.constant dense<0.000000e+00> : vector<8x16xf32>
    %189 = tpu.matmul %186, %188, %cst_61 {dimension_numbers = #tpu.dot_dimension_numbers<[1], [0], [0], [1], [0, 0, 1, 1], [], []>} : vector<8x4xbf16>, vector<4x16xbf16>, vector<8x16xf32> -> vector<8x16xf32>
    %190 = arith.addf %166, %189 : vector<8x16xf32>
    %191 = vector.extract_strided_slice %6 {offsets = [8, 12], sizes = [8, 4], strides = [1, 1]} : vector<16x16xf32> to vector<8x4xf32>
    %192 = arith.truncf %191 : vector<8x4xf32> to vector<8x4xbf16>
    %193 = vector.extract_strided_slice %7 {offsets = [8, 12], sizes = [8, 4], strides = [1, 1]} : vector<16x16xf32> to vector<8x4xf32>
    %194 = arith.truncf %193 : vector<8x4xf32> to vector<8x4xbf16>
    %195 = vector.extract_strided_slice %8 {offsets = [8, 12], sizes = [8, 4], strides = [1, 1]} : vector<16x16xf32> to vector<8x4xf32>
    %196 = arith.truncf %195 : vector<8x4xf32> to vector<8x4xbf16>
    %cst_62 = arith.constant dense<0.000000e+00> : vector<8x8xf32>
    %197 = tpu.matmul %192, %194, %cst_62 {dimension_numbers = #tpu.dot_dimension_numbers<[1], [1], [0], [0], [0, 0, 1, 0], [], []>} : vector<8x4xbf16>, vector<8x4xbf16>, vector<8x8xf32> -> vector<8x8xf32>
    %cst_63 = arith.constant dense<0xFF800000> : vector<8xf32>
    %198 = vector.multi_reduction <maximumf>, %197, %cst_63 [0] : vector<8x8xf32> to vector<8xf32>
    %199 = vector.shape_cast %198 : vector<8xf32> to vector<1x8xf32>
    %200 = vector.broadcast %199 : vector<1x8xf32> to vector<8x8xf32>
    %201 = arith.subf %197, %200 : vector<8x8xf32>
    %202 = math.exp %201 : vector<8x8xf32>
    %cst_64 = arith.constant dense<0.000000e+00> : vector<8xf32>
    %203 = vector.multi_reduction <add>, %202, %cst_64 [0] : vector<8x8xf32> to vector<8xf32>
    %204 = vector.shape_cast %203 : vector<8xf32> to vector<1x8xf32>
    %205 = tpu.reciprocal %204 : vector<1x8xf32> -> vector<1x8xf32>
    %206 = vector.broadcast %205 : vector<1x8xf32> to vector<8x8xf32>
    %207 = arith.mulf %202, %206 : vector<8x8xf32>
    %208 = arith.truncf %207 : vector<8x8xf32> to vector<8x8xbf16>
    %cst_65 = arith.constant dense<0.000000e+00> : vector<8x4xf32>
    %209 = tpu.matmul %208, %196, %cst_65 {dimension_numbers = #tpu.dot_dimension_numbers<[1], [0], [0], [1], [0, 0, 1, 1], [], []>} : vector<8x8xbf16>, vector<8x4xbf16>, vector<8x4xf32> -> vector<8x4xf32>
    %210 = arith.truncf %209 : vector<8x4xf32> to vector<8x4xbf16>
    %c3_66 = arith.constant 3 : index
    %c0_67 = arith.constant 0 : index
    %c0_68 = arith.constant 0 : index
    %211 = vector.load %arg4[%c3_66, %c0_67, %c0_68] : memref<4x4x16xbf16, #tpu.memory_space<vmem>>, vector<1x4x16xbf16>
    %212 = vector.shape_cast %211 : vector<1x4x16xbf16> to vector<4x16xbf16>
    %cst_69 = arith.constant dense<0.000000e+00> : vector<8x16xf32>
    %213 = tpu.matmul %210, %212, %cst_69 {dimension_numbers = #tpu.dot_dimension_numbers<[1], [0], [0], [1], [0, 0, 1, 1], [], []>} : vector<8x4xbf16>, vector<4x16xbf16>, vector<8x16xf32> -> vector<8x16xf32>
    %214 = arith.addf %190, %213 : vector<8x16xf32>
    %c0_70 = arith.constant 0 : index
    %c0_71 = arith.constant 0 : index
    %215 = vector.load %arg5[%c0_70, %c0_71] : memref<1x16xf32, #tpu.memory_space<vmem>>, vector<1x16xf32>
    %216 = vector.broadcast %215 : vector<1x16xf32> to vector<8x16xf32>
    %217 = arith.addf %214, %216 : vector<8x16xf32>
    %218 = vector.extract_strided_slice %217 {offsets = [0, 0], sizes = [1, 16], strides = [1, 1]} : vector<8x16xf32> to vector<1x16xf32>
    %219 = vector.extract_strided_slice %217 {offsets = [1, 0], sizes = [1, 16], strides = [1, 1]} : vector<8x16xf32> to vector<1x16xf32>
    %220 = vector.extract_strided_slice %217 {offsets = [2, 0], sizes = [1, 16], strides = [1, 1]} : vector<8x16xf32> to vector<1x16xf32>
    %221 = vector.extract_strided_slice %217 {offsets = [3, 0], sizes = [1, 16], strides = [1, 1]} : vector<8x16xf32> to vector<1x16xf32>
    %222 = vector.extract_strided_slice %217 {offsets = [4, 0], sizes = [1, 16], strides = [1, 1]} : vector<8x16xf32> to vector<1x16xf32>
    %223 = vector.extract_strided_slice %217 {offsets = [5, 0], sizes = [1, 16], strides = [1, 1]} : vector<8x16xf32> to vector<1x16xf32>
    %224 = vector.extract_strided_slice %217 {offsets = [6, 0], sizes = [1, 16], strides = [1, 1]} : vector<8x16xf32> to vector<1x16xf32>
    %225 = vector.extract_strided_slice %217 {offsets = [7, 0], sizes = [1, 16], strides = [1, 1]} : vector<8x16xf32> to vector<1x16xf32>
    %226 = tpu.concatenate %218, %219, %220, %221, %222, %223, %224, %225 in 1 : vector<1x16xf32>, vector<1x16xf32>, vector<1x16xf32>, vector<1x16xf32>, vector<1x16xf32>, vector<1x16xf32>, vector<1x16xf32>, vector<1x16xf32> -> vector<1x128xf32>
    %227 = tpu.concatenate %117, %226 in 0 : vector<1x128xf32>, vector<1x128xf32> -> vector<2x128xf32>
    %c0_72 = arith.constant 0 : index
    %c0_73 = arith.constant 0 : index
    %228 = vector.load %arg6[%c0_72, %c0_73] : memref<2x128xf32, #tpu.memory_space<vmem>>, vector<2x128xf32>
    tpu.vector_store %arg6[%c0_72, %c0_73], %227 {strides = array<i32>} : memref<2x128xf32, #tpu.memory_space<vmem>>, vector<2x128xf32>,
    return
  }
  func.func @transform_0(%arg0: i32) -> (i32, i32) {
    %c0_i32 = arith.constant 0 : i32
    %c0_i32_0 = arith.constant 0 : i32
    return %arg0, %c0_i32 : i32, i32
  }
  func.func @transform_1(%arg0: i32) -> (i32, i32) {
    %c0_i32 = arith.constant 0 : i32
    %c0_i32_0 = arith.constant 0 : i32
    %c0_i32_1 = arith.constant 0 : i32
    return %c0_i32, %c0_i32_0 : i32, i32
  }
  func.func @transform_2(%arg0: i32) -> (i32, i32) {
    %c0_i32 = arith.constant 0 : i32
    %c0_i32_0 = arith.constant 0 : i32
    %c0_i32_1 = arith.constant 0 : i32
    return %c0_i32, %c0_i32_0 : i32, i32
  }
  func.func @transform_3(%arg0: i32) -> (i32, i32, i32) {
    %c0_i32 = arith.constant 0 : i32
    %c0_i32_0 = arith.constant 0 : i32
    %c0_i32_1 = arith.constant 0 : i32
    %c0_i32_2 = arith.constant 0 : i32
    return %c0_i32, %c0_i32_0, %c0_i32_1 : i32, i32, i32
  }
  func.func @transform_4(%arg0: i32) -> (i32, i32) {
    %c0_i32 = arith.constant 0 : i32
    %c0_i32_0 = arith.constant 0 : i32
    %c0_i32_1 = arith.constant 0 : i32
    return %c0_i32, %c0_i32_0 : i32, i32
  }
  func.func @transform_5(%arg0: i32) -> (i32, i32) {
    %c0_i32 = arith.constant 0 : i32
    %c0_i32_0 = arith.constant 0 : i32
    return %arg0, %c0_i32 : i32, i32
  }
}

</mosaic_0001>

<llo_original>
// kernel: tpu_custom_call.1
$region0: #{tpu_custom_call.1}
  #allocation0 [shape = 'u32[]', space=smem, size = 0x4, offset = 0x4, fixed_abs, tag = 'smem constant byte address 0x4 - core index']
  #allocation1 [shape = 'u32[72,128]{1,0:T(1,128)}', space=vmem, size = 0x9000, scoped, tag = 'internal scratch']
  %s0 = inlined_call_operand.hbm [shape: bf16[16,32], index: 0, kind: input, shape index: {}]
  %s1 = inlined_call_operand.hbm [shape: bf16[32,48], index: 1, kind: input, shape index: {}]
  %s2 = inlined_call_operand.vmem [shape: f32[1,48], index: 2, kind: input, shape index: {}]
  %s3 = inlined_call_operand.hbm [shape: bf16[4,4,16], index: 3, kind: input, shape index: {}]
  %s4 = inlined_call_operand.vmem [shape: f32[1,16], index: 4, kind: input, shape index: {}]
  %s5 = inlined_call_operand.hbm [shape: f32[2,128], index: 5, kind: output, shape index: {}]
  %s6 = sld [smem:[#allocation0]]
  $region42: #{tpu_custom_call.1} parent=0
    _
  %s8 = ssub.s32 1, %s6
  %s9 = scalar_select 0, %s8, %s6
  $region1: #{tpu_custom_call.1} parent=0
    #allocation2 [shape = 'u8[4096]{0}', space=vmem, size = 0x1000, scoped, tag = 'input window, operand 0, single buffered']
    #allocation3 [shape = 's32[1]{0}', space=sflag, size = 0x4, scoped, tag = 'scoped memory for tpu_custom_call.1']
    #allocation4 [shape = 's32[1]{0}', space=sflag, size = 0x4, scoped, tag = 'scoped memory for tpu_custom_call.1']
    #allocation5 [shape = 'u8[8192]{0}', space=vmem, size = 0x2000, scoped, tag = 'input window, operand 1, single buffered']
    #allocation6 [shape = 's32[1]{0}', space=sflag, size = 0x4, scoped, tag = 'scoped memory for tpu_custom_call.1']
    #allocation7 [shape = 'u8[4096]{0}', space=vmem, size = 0x1000, scoped, tag = 'input window, operand 3, single buffered']
    #allocation8 [shape = 'u8[1024]{0}', space=vmem, size = 0x400, scoped, tag = 'output window, operand 0, single buffered']
    %10 = vsyncpa [#allocation3], 0
    %11 = vsyncpa [#allocation6], 0
    %12 = vsyncpa [#allocation4], 0
    // Predicated region
    $region2: #{tpu_custom_call.1} parent=1 // pred_check
      _
    $region3: #{tpu_custom_call.1} parent=1 // pred_check_branch
      %14 = sbr.rel (0) target = $region5
    $region4: #{tpu_custom_call.1} parent=1 // pred_region
      %16 = vsyncadd [#allocation3], 0
      %s17 = sshll.u32 %s0, 4
      %s18 = int_to_ptr.hbm [resolvable:$true] %s17
      %s19 = sshll.u32 [#allocation2], 4
      %s20 = int_to_ptr.vmem [resolvable:$true] %s19
      %25 = dma.hbm_to_vmem [thread:$0]  %s18, 128, %s20, [#allocation3], 64, 64, 4
    $region5: #{tpu_custom_call.1} parent=1 // pred_fallthru
      _
    // Predicated region
    $region6: #{tpu_custom_call.1} parent=1 // pred_check
      _
    $region7: #{tpu_custom_call.1} parent=1 // pred_check_branch
      %27 = sbr.rel (0) target = $region9
    $region8: #{tpu_custom_call.1} parent=1 // pred_region
      %29 = vsyncadd [#allocation6], 0
      %s30 = sshll.u32 %s1, 4
      %s31 = int_to_ptr.hbm [resolvable:$true] %s30
      %s32 = sshll.u32 [#allocation5], 4
      %s33 = int_to_ptr.vmem [resolvable:$true] %s32
      %38 = dma.hbm_to_vmem [thread:$0]  %s31, 256, %s33, [#allocation6], 64, 64, 4
    $region9: #{tpu_custom_call.1} parent=1 // pred_fallthru
      _
    // Predicated region
    $region10: #{tpu_custom_call.1} parent=1 // pred_check
      _
    $region11: #{tpu_custom_call.1} parent=1 // pred_check_branch
      %40 = sbr.rel (0) target = $region13
    $region12: #{tpu_custom_call.1} parent=1 // pred_region
      _
    $region13: #{tpu_custom_call.1} parent=1 // pred_fallthru
      _
    // Predicated region
    $region14: #{tpu_custom_call.1} parent=1 // pred_check
      _
    $region15: #{tpu_custom_call.1} parent=1 // pred_check_branch
      %42 = sbr.rel (0) target = $region17
    $region16: #{tpu_custom_call.1} parent=1 // pred_region
      %44 = vsyncadd [#allocation6], 0
      %s45 = sshll.u32 %s3, 4
      %s46 = int_to_ptr.hbm [resolvable:$true] %s45
      %s47 = sshll.u32 [#allocation7], 4
      %s48 = int_to_ptr.vmem [resolvable:$true] %s47
      %53 = dma.hbm_to_vmem [thread:$0]  %s46, 128, %s48, [#allocation6], 32, 32, 2
    $region17: #{tpu_custom_call.1} parent=1 // pred_fallthru
      _
    // Predicated region
    $region18: #{tpu_custom_call.1} parent=1 // pred_check
      _
    $region19: #{tpu_custom_call.1} parent=1 // pred_check_branch
      %55 = sbr.rel (0) target = $region21
    $region20: #{tpu_custom_call.1} parent=1 // pred_region
      _
    $region21: #{tpu_custom_call.1} parent=1 // pred_fallthru
      _
    // Predicated region
    $region22: #{tpu_custom_call.1} parent=1 // pred_check
      _
    $region23: #{tpu_custom_call.1} parent=1 // pred_check_branch
      %57 = sbr.rel (0) target = $region25
    $region24: #{tpu_custom_call.1} parent=1 // pred_region
      %59 = dma.done [#allocation3], 128
    $region25: #{tpu_custom_call.1} parent=1 // pred_fallthru
      _
    // Predicated region
    $region26: #{tpu_custom_call.1} parent=1 // pred_check
      _
    $region27: #{tpu_custom_call.1} parent=1 // pred_check_branch
      %61 = sbr.rel (0) target = $region29
    $region28: #{tpu_custom_call.1} parent=1 // pred_region
      %63 = dma.done [#allocation6], 256
    $region29: #{tpu_custom_call.1} parent=1 // pred_fallthru
      _
    // Predicated region
    $region30: #{tpu_custom_call.1} parent=1 // pred_check
      _
    $region31: #{tpu_custom_call.1} parent=1 // pred_check_branch
      %65 = sbr.rel (0) target = $region33
    $region32: #{tpu_custom_call.1} parent=1 // pred_region
      %67 = dma.done [#allocation6], 128
    $region33: #{tpu_custom_call.1} parent=1 // pred_fallthru
      _
    %v69 = vld [vmem:[#allocation2] sm:$0xf]
    %v70 = vld [vmem:[#allocation2 + $0x4] sm:$0xf]
    %v71 = vld [vmem:[#allocation5] sm:$0xf]
    %v72 = vld [vmem:[#allocation5 + $0x4] sm:$0xf]
    %v73 = vld [vmem:[#allocation5 + $0x8] sm:$0xf]
    %v74 = vld [vmem:[#allocation5 + $0xc] sm:$0xf]
    %v75 = vld [vmem:[%s2] sm:$0x1]
    %v77 = vperm.slane %v75, 0
    %v81 = vunpack.c.l.b16 %v69
    %v82 = vunpack.c.l.b16 %v70
    %v83 = vpack.c.b16 %v82, %v81
    %v88 = vunpack.c.l.b16 %v71
    %v89 = vunpack.c.l.b16 %v72
    %v90 = vunpack.c.l.b16 %v73
    %v91 = vunpack.c.l.b16 %v74
    %v92 = vpack.c.b16 %v89, %v88
    %v93 = vpack.c.b16 %v91, %v90
    %vm96 = vcmask 261120
    %v98 = vsel %vm96, %v83, 0
    %100 = vmatpush.bf16.msra.mxu0 0
    %101 = vmatpush.bf16.msra.mxu0 0
    %102 = vmatpush.bf16.msra.mxu0 0
    %103 = vmatpush.bf16.msra.mxu0 0
    %104 = vmatpush.bf16.msra.mxu0 0
    %105 = vmatpush.bf16.msra.mxu0 0
    %106 = vmatpush.bf16.msra.mxu0 %v93
    %107 = vmatpush.bf16.msra.mxu0 %v92
    %108 = vmatmul.bf16.gmra.mxu0 %v98
    %v109 = vpop.f32.mrf.mxu0
    %v110 = vadd.f32 %v77, %v109
    %v111 = vpop.f32.mrf.mxu0
    %v112 = vadd.f32 %v77, %v111
    %113 = vdwg.mxu0
    %v114 = vpack.c.bf16 %v110, %v110
    %116 = vrot.lane.b32.xlu0 %v114, 112
    %v117 = vpop.permute.xlu0 %116
    %vm118 = vcmask 31744
    %v120 = vsel %vm118, %v114, 0
    %v123 = vsel %vm118, %v117, 0
    %125 = vmatpush.bf16.xpose.msra.mxu0 0
    %126 = vmatpush.bf16.xpose.msra.mxu0 0
    %127 = vmatpush.bf16.xpose.msra.mxu0 0
    %128 = vmatpush.bf16.xpose.msra.mxu0 0
    %129 = vmatpush.bf16.xpose.msra.mxu0 0
    %130 = vmatpush.bf16.xpose.msra.mxu0 0
    %131 = vmatpush.bf16.xpose.msra.mxu0 0
    %132 = vmatpush.bf16.xpose.msra.mxu0 %v123
    %133 = vmatmul.bf16.gmra.mxu0 %v120
    %v134 = vpop.f32.mrf.mxu0
    %v135 = vadd.f32 0.0, %v134
    %v136 = vpop.f32.mrf.mxu0
    %137 = vdwg.mxu0
    %vm138 = vcmask 64512
    %v139 = vsel %vm138, %v135, -inf
    %v140 = vrot.slane %v139, 4
    %v141 = vmax.f32 %v139, %v140
    %v142 = vrot.slane %v141, 2
    %v143 = vmax.f32 %v141, %v142
    %v144 = vrot.slane %v143, 1
    %v145 = vmax.f32 %v143, %v144
    %v146 = vsub.f32 %v135, %v145
    %v147 = vmul.f32 %v146, 1.442695
    %v148 = vpow.pop %v147
    %v149 = vsel %vm138, %v148, 0.0
    %v150 = vrot.slane %v149, 4
    %v151 = vadd.f32 %v149, %v150
    %v152 = vrot.slane %v151, 2
    %v153 = vadd.f32 %v151, %v152
    %v154 = vrot.slane %v153, 1
    %v155 = vadd.f32 %v153, %v154
    %v156 = vrcp.pop %v155
    %v157 = vmul.f32 %v155, %v156
    %v158 = vsub.f32 1.0, %v157
    %v159 = vmul.f32 %v156, %v158
    %v160 = vadd.f32 %v156, %v159
    %vm161 = vweird.f32 %v155
    %vm162 = vweird.f32 %v156
    %vm163 = vmor %vm161, %vm162
    %v164 = vsel %vm163, %v156, %v160
    %v165 = vand.u32 2147483647, %v155
    %vm166 = vcmp.eq.f32.partialorder %v165, 8.507059e+37
    %v167 = vand.u32 %v155, 2147483648
    %v168 = vor.u32 1.1754944e-38, %v167
    %v169 = vsel %vm166, %v168, %v164
    %v170 = vmul.f32 %v148, %v169
    %v171 = vpack.c.bf16 %v170, %v170
    %172 = vrot.lane.b32.xlu0 %v114, 96
    %v173 = vpop.permute.xlu0 %172
    %v175 = vsel %vm138, %v171, 0
    %vm177 = vcmask 1043456
    %v179 = vsel %vm177, %v173, 0
    %181 = vmatpush.bf16.msra.mxu0 0
    %182 = vmatpush.bf16.msra.mxu0 0
    %183 = vmatpush.bf16.msra.mxu0 0
    %184 = vmatpush.bf16.msra.mxu0 0
    %185 = vmatpush.bf16.msra.mxu0 0
    %186 = vmatpush.bf16.msra.mxu0 0
    %187 = vmatpush.bf16.msra.mxu0 0
    %188 = vmatpush.bf16.msra.mxu0 %v179
    %189 = vmatmul.bf16.gmra.mxu0 %v175
    %v190 = vpop.f32.mrf.mxu0
    %v191 = vadd.f32 0.0, %v190
    %v192 = vpop.f32.mrf.mxu0
    %193 = vdwg.mxu0
    %v194 = vpack.c.bf16 %v191, %v191
    %v195 = vld [vmem:[#allocation7] sm:$0x3]
    %196 = vrot.lane.b32.xlu0 %v114, 124
    %v197 = vpop.permute.xlu0 %196
    %198 = vrot.lane.b32.xlu0 %v114, 108
    %v199 = vpop.permute.xlu0 %198
    %v201 = vsel %vm118, %v197, 0
    %v204 = vsel %vm118, %v199, 0
    %206 = vmatpush.bf16.xpose.msra.mxu0 0
    %207 = vmatpush.bf16.xpose.msra.mxu0 0
    %208 = vmatpush.bf16.xpose.msra.mxu0 0
    %209 = vmatpush.bf16.xpose.msra.mxu0 0
    %210 = vmatpush.bf16.xpose.msra.mxu0 0
    %211 = vmatpush.bf16.xpose.msra.mxu0 0
    %212 = vmatpush.bf16.xpose.msra.mxu0 0
    %213 = vmatpush.bf16.xpose.msra.mxu0 %v204
    %214 = vmatmul.bf16.gmra.mxu0 %v201
    %v215 = vpop.f32.mrf.mxu0
    %v216 = vadd.f32 0.0, %v215
    %v217 = vpop.f32.mrf.mxu0
    %218 = vdwg.mxu0
    %v219 = vsel %vm138, %v216, -inf
    %v220 = vrot.slane %v219, 4
    %v221 = vmax.f32 %v219, %v220
    %v222 = vrot.slane %v221, 2
    %v223 = vmax.f32 %v221, %v222
    %v224 = vrot.slane %v223, 1
    %v225 = vmax.f32 %v223, %v224
    %v226 = vsub.f32 %v216, %v225
    %v227 = vmul.f32 %v226, 1.442695
    %v228 = vpow.pop %v227
    %v229 = vsel %vm138, %v228, 0.0
    %v230 = vrot.slane %v229, 4
    %v231 = vadd.f32 %v229, %v230
    %v232 = vrot.slane %v231, 2
    %v233 = vadd.f32 %v231, %v232
    %v234 = vrot.slane %v233, 1
    %v235 = vadd.f32 %v233, %v234
    %v236 = vrcp.pop %v235
    %v237 = vmul.f32 %v235, %v236
    %v238 = vsub.f32 1.0, %v237
    %v239 = vmul.f32 %v236, %v238
    %v240 = vadd.f32 %v236, %v239
    %vm241 = vweird.f32 %v235
    %vm242 = vweird.f32 %v236
    %vm243 = vmor %vm241, %vm242
    %v244 = vsel %vm243, %v236, %v240
    %v245 = vand.u32 2147483647, %v235
    %vm246 = vcmp.eq.f32.partialorder %v245, 8.507059e+37
    %v247 = vand.u32 %v235, 2147483648
    %v248 = vor.u32 1.1754944e-38, %v247
    %v249 = vsel %vm246, %v248, %v244
    %v250 = vmul.f32 %v228, %v249
    %v251 = vpack.c.bf16 %v250, %v250
    %252 = vrot.lane.b32.xlu0 %v114, 92
    %v253 = vpop.permute.xlu0 %252
    %v255 = vsel %vm138, %v251, 0
    %v258 = vsel %vm177, %v253, 0
    %260 = vmatpush.bf16.msra.mxu0 0
    %261 = vmatpush.bf16.msra.mxu0 0
    %262 = vmatpush.bf16.msra.mxu0 0
    %263 = vmatpush.bf16.msra.mxu0 0
    %264 = vmatpush.bf16.msra.mxu0 0
    %265 = vmatpush.bf16.msra.mxu0 0
    %266 = vmatpush.bf16.msra.mxu0 0
    %267 = vmatpush.bf16.msra.mxu0 %v258
    %268 = vmatmul.bf16.gmra.mxu0 %v255
    %v269 = vpop.f32.mrf.mxu0
    %v270 = vadd.f32 0.0, %v269
    %v271 = vpop.f32.mrf.mxu0
    %272 = vdwg.mxu0
    %v273 = vpack.c.bf16 %v270, %v270
    %s274 = scalar_lea.vmem [#allocation7], 2
    %v275 = vld [vmem:[%s274] sm:$0x3]
    %v277 = vsel %vm118, %v273, 0
    %vm279 = vcmask 1041408
    %v281 = vsel %vm279, %v275, 0
    %283 = vmatpush.bf16.msra.mxu0 0
    %284 = vmatpush.bf16.msra.mxu0 0
    %285 = vmatpush.bf16.msra.mxu0 0
    %286 = vmatpush.bf16.msra.mxu0 0
    %287 = vmatpush.bf16.msra.mxu0 0
    %288 = vmatpush.bf16.msra.mxu0 0
    %289 = vmatpush.bf16.msra.mxu0 0
    %290 = vmatpush.bf16.msra.mxu0 %v281
    %291 = vmatmul.bf16.gmra.mxu0 %v277
    %v292 = vpop.f32.mrf.mxu0
    %v293 = vadd.f32 0.0, %v292
    %v294 = vpop.f32.mrf.mxu0
    %295 = vdwg.mxu0
    %v297 = vsel %vm118, %v194, 0
    %v300 = vsel %vm279, %v195, 0
    %302 = vmatpush.bf16.msra.mxu0 0
    %303 = vmatpush.bf16.msra.mxu0 0
    %304 = vmatpush.bf16.msra.mxu0 0
    %305 = vmatpush.bf16.msra.mxu0 0
    %306 = vmatpush.bf16.msra.mxu0 0
    %307 = vmatpush.bf16.msra.mxu0 0
    %308 = vmatpush.bf16.msra.mxu0 0
    %309 = vmatpush.bf16.msra.mxu0 %v300
    %310 = vmatmul.bf16.gmra.mxu0 %v297
    %v311 = vpop.f32.mrf.mxu0
    %v312 = vadd.f32 %v293, %v311
    %v313 = vpop.f32.mrf.mxu0
    %314 = vdwg.mxu0
    %315 = vrot.lane.b32.xlu0 %v114, 120
    %v316 = vpop.permute.xlu0 %315
    %317 = vrot.lane.b32.xlu0 %v114, 104
    %v318 = vpop.permute.xlu0 %317
    %v320 = vsel %vm118, %v316, 0
    %v323 = vsel %vm118, %v318, 0
    %325 = vmatpush.bf16.xpose.msra.mxu0 0
    %326 = vmatpush.bf16.xpose.msra.mxu0 0
    %327 = vmatpush.bf16.xpose.msra.mxu0 0
    %328 = vmatpush.bf16.xpose.msra.mxu0 0
    %329 = vmatpush.bf16.xpose.msra.mxu0 0
    %330 = vmatpush.bf16.xpose.msra.mxu0 0
    %331 = vmatpush.bf16.xpose.msra.mxu0 0
    %332 = vmatpush.bf16.xpose.msra.mxu0 %v323
    %333 = vmatmul.bf16.gmra.mxu0 %v320
    %v334 = vpop.f32.mrf.mxu0
    %v335 = vadd.f32 0.0, %v334
    %v336 = vpop.f32.mrf.mxu0
    %337 = vdwg.mxu0
    %v338 = vsel %vm138, %v335, -inf
    %v339 = vrot.slane %v338, 4
    %v340 = vmax.f32 %v338, %v339
    %v341 = vrot.slane %v340, 2
    %v342 = vmax.f32 %v340, %v341
    %v343 = vrot.slane %v342, 1
    %v344 = vmax.f32 %v342, %v343
    %v345 = vsub.f32 %v335, %v344
    %v346 = vmul.f32 %v345, 1.442695
    %v347 = vpow.pop %v346
    %v348 = vsel %vm138, %v347, 0.0
    %v349 = vrot.slane %v348, 4
    %v350 = vadd.f32 %v348, %v349
    %v351 = vrot.slane %v350, 2
    %v352 = vadd.f32 %v350, %v351
    %v353 = vrot.slane %v352, 1
    %v354 = vadd.f32 %v352, %v353
    %v355 = vrcp.pop %v354
    %v356 = vmul.f32 %v354, %v355
    %v357 = vsub.f32 1.0, %v356
    %v358 = vmul.f32 %v355, %v357
    %v359 = vadd.f32 %v355, %v358
    %vm360 = vweird.f32 %v354
    %vm361 = vweird.f32 %v355
    %vm362 = vmor %vm360, %vm361
    %v363 = vsel %vm362, %v355, %v359
    %v364 = vand.u32 2147483647, %v354
    %vm365 = vcmp.eq.f32.partialorder %v364, 8.507059e+37
    %v366 = vand.u32 %v354, 2147483648
    %v367 = vor.u32 1.1754944e-38, %v366
    %v368 = vsel %vm365, %v367, %v363
    %v369 = vmul.f32 %v347, %v368
    %v370 = vpack.c.bf16 %v369, %v369
    %371 = vrot.lane.b32.xlu0 %v114, 88
    %v372 = vpop.permute.xlu0 %371
    %v374 = vsel %vm138, %v370, 0
    %v377 = vsel %vm177, %v372, 0
    %379 = vmatpush.bf16.msra.mxu0 0
    %380 = vmatpush.bf16.msra.mxu0 0
    %381 = vmatpush.bf16.msra.mxu0 0
    %382 = vmatpush.bf16.msra.mxu0 0
    %383 = vmatpush.bf16.msra.mxu0 0
    %384 = vmatpush.bf16.msra.mxu0 0
    %385 = vmatpush.bf16.msra.mxu0 0
    %386 = vmatpush.bf16.msra.mxu0 %v377
    %387 = vmatmul.bf16.gmra.mxu0 %v374
    %v388 = vpop.f32.mrf.mxu0
    %v389 = vadd.f32 0.0, %v388
    %v390 = vpop.f32.mrf.mxu0
    %391 = vdwg.mxu0
    %v392 = vpack.c.bf16 %v389, %v389
    %s393 = scalar_lea.vmem [#allocation7], 4
    %v394 = vld [vmem:[%s393] sm:$0x3]
    %v396 = vsel %vm118, %v392, 0
    %v399 = vsel %vm279, %v394, 0
    %401 = vmatpush.bf16.msra.mxu0 0
    %402 = vmatpush.bf16.msra.mxu0 0
    %403 = vmatpush.bf16.msra.mxu0 0
    %404 = vmatpush.bf16.msra.mxu0 0
    %405 = vmatpush.bf16.msra.mxu0 0
    %406 = vmatpush.bf16.msra.mxu0 0
    %407 = vmatpush.bf16.msra.mxu0 0
    %408 = vmatpush.bf16.msra.mxu0 %v399
    %409 = vmatmul.bf16.gmra.mxu0 %v396
    %v410 = vpop.f32.mrf.mxu0
    %v411 = vadd.f32 0.0, %v410
    %v412 = vpop.f32.mrf.mxu0
    %413 = vdwg.mxu0
    %v414 = vadd.f32 %v312, %v411
    %415 = vrot.lane.b32.xlu0 %v114, 116
    %v416 = vpop.permute.xlu0 %415
    %417 = vrot.lane.b32.xlu0 %v114, 100
    %v418 = vpop.permute.xlu0 %417
    %v420 = vsel %vm118, %v416, 0
    %v423 = vsel %vm118, %v418, 0
    %425 = vmatpush.bf16.xpose.msra.mxu0 0
    %426 = vmatpush.bf16.xpose.msra.mxu0 0
    %427 = vmatpush.bf16.xpose.msra.mxu0 0
    %428 = vmatpush.bf16.xpose.msra.mxu0 0
    %429 = vmatpush.bf16.xpose.msra.mxu0 0
    %430 = vmatpush.bf16.xpose.msra.mxu0 0
    %431 = vmatpush.bf16.xpose.msra.mxu0 0
    %432 = vmatpush.bf16.xpose.msra.mxu0 %v423
    %433 = vmatmul.bf16.gmra.mxu0 %v420
    %v434 = vpop.f32.mrf.mxu0
    %v435 = vadd.f32 0.0, %v434
    %v436 = vpop.f32.mrf.mxu0
    %437 = vdwg.mxu0
    %v438 = vsel %vm138, %v435, -inf
    %v439 = vrot.slane %v438, 4
    %v440 = vmax.f32 %v438, %v439
    %v441 = vrot.slane %v440, 2
    %v442 = vmax.f32 %v440, %v441
    %v443 = vrot.slane %v442, 1
    %v444 = vmax.f32 %v442, %v443
    %v445 = vsub.f32 %v435, %v444
    %v446 = vmul.f32 %v445, 1.442695
    %v447 = vpow.pop %v446
    %v448 = vsel %vm138, %v447, 0.0
    %v449 = vrot.slane %v448, 4
    %v450 = vadd.f32 %v448, %v449
    %v451 = vrot.slane %v450, 2
    %v452 = vadd.f32 %v450, %v451
    %v453 = vrot.slane %v452, 1
    %v454 = vadd.f32 %v452, %v453
    %v455 = vrcp.pop %v454
    %v456 = vmul.f32 %v454, %v455
    %v457 = vsub.f32 1.0, %v456
    %v458 = vmul.f32 %v455, %v457
    %v459 = vadd.f32 %v455, %v458
    %vm460 = vweird.f32 %v454
    %vm461 = vweird.f32 %v455
    %vm462 = vmor %vm460, %vm461
    %v463 = vsel %vm462, %v455, %v459
    %v464 = vand.u32 2147483647, %v454
    %vm465 = vcmp.eq.f32.partialorder %v464, 8.507059e+37
    %v466 = vand.u32 %v454, 2147483648
    %v467 = vor.u32 1.1754944e-38, %v466
    %v468 = vsel %vm465, %v467, %v463
    %v469 = vmul.f32 %v447, %v468
    %v470 = vpack.c.bf16 %v469, %v469
    %471 = vrot.lane.b32.xlu0 %v114, 84
    %v472 = vpop.permute.xlu0 %471
    %v474 = vsel %vm138, %v470, 0
    %v477 = vsel %vm177, %v472, 0
    %479 = vmatpush.bf16.msra.mxu0 0
    %480 = vmatpush.bf16.msra.mxu0 0
    %481 = vmatpush.bf16.msra.mxu0 0
    %482 = vmatpush.bf16.msra.mxu0 0
    %483 = vmatpush.bf16.msra.mxu0 0
    %484 = vmatpush.bf16.msra.mxu0 0
    %485 = vmatpush.bf16.msra.mxu0 0
    %486 = vmatpush.bf16.msra.mxu0 %v477
    %487 = vmatmul.bf16.gmra.mxu0 %v474
    %v488 = vpop.f32.mrf.mxu0
    %v489 = vadd.f32 0.0, %v488
    %v490 = vpop.f32.mrf.mxu0
    %491 = vdwg.mxu0
    %v492 = vpack.c.bf16 %v489, %v489
    %s493 = scalar_lea.vmem [#allocation7], 6
    %v494 = vld [vmem:[%s493] sm:$0x3]
    %v496 = vsel %vm118, %v492, 0
    %v499 = vsel %vm279, %v494, 0
    %501 = vmatpush.bf16.msra.mxu0 0
    %502 = vmatpush.bf16.msra.mxu0 0
    %503 = vmatpush.bf16.msra.mxu0 0
    %504 = vmatpush.bf16.msra.mxu0 0
    %505 = vmatpush.bf16.msra.mxu0 0
    %506 = vmatpush.bf16.msra.mxu0 0
    %507 = vmatpush.bf16.msra.mxu0 0
    %508 = vmatpush.bf16.msra.mxu0 %v499
    %509 = vmatmul.bf16.gmra.mxu0 %v496
    %v510 = vpop.f32.mrf.mxu0
    %v511 = vadd.f32 0.0, %v510
    %v512 = vpop.f32.mrf.mxu0
    %513 = vdwg.mxu0
    %v514 = vadd.f32 %v414, %v511
    %v515 = vld [vmem:[%s4] sm:$0x1]
    %v517 = vperm.slane %v515, 0
    %v519 = vadd.f32 %v514, %v517
    %v521 = vrot.slane %v519, 1
    %522 = vrot.lane.b32.xlu0 %v521, 16
    %v523 = vpop.permute.xlu0 %522
    %v525 = vrot.slane %v519, 2
    %526 = vrot.lane.b32.xlu0 %v525, 32
    %v527 = vpop.permute.xlu0 %526
    %v529 = vrot.slane %v519, 3
    %530 = vrot.lane.b32.xlu0 %v529, 48
    %v531 = vpop.permute.xlu0 %530
    %v533 = vrot.slane %v519, 4
    %534 = vrot.lane.b32.xlu0 %v533, 64
    %v535 = vpop.permute.xlu0 %534
    %v537 = vrot.slane %v519, 5
    %538 = vrot.lane.b32.xlu0 %v537, 80
    %v539 = vpop.permute.xlu0 %538
    %v541 = vrot.slane %v519, 6
    %542 = vrot.lane.b32.xlu0 %v541, 96
    %v543 = vpop.permute.xlu0 %542
    %v545 = vrot.slane %v519, 7
    %546 = vrot.lane.b32.xlu0 %v545, 112
    %v547 = vpop.permute.xlu0 %546
    %vm549 = vcmask 130048
    %v550 = vsel %vm549, %v519, %v523
    %v551 = vsel %vm96, %v550, %v527
    %vm552 = vcmask 392192
    %v553 = vsel %vm552, %v551, %v531
    %vm554 = vcmask 523264
    %v555 = vsel %vm554, %v553, %v535
    %vm556 = vcmask 654336
    %v557 = vsel %vm556, %v555, %v539
    %vm558 = vcmask 785408
    %v559 = vsel %vm558, %v557, %v543
    %vm560 = vcmask 916480
    %v561 = vsel %vm560, %v559, %v547
    %v562 = vpack.c.bf16 %v112, %v112
    %564 = vrot.lane.b32.xlu0 %v562, 112
    %v565 = vpop.permute.xlu0 %564
    %v567 = vsel %vm118, %v562, 0
    %v570 = vsel %vm118, %v565, 0
    %572 = vmatpush.bf16.xpose.msra.mxu0 0
    %573 = vmatpush.bf16.xpose.msra.mxu0 0
    %574 = vmatpush.bf16.xpose.msra.mxu0 0
    %575 = vmatpush.bf16.xpose.msra.mxu0 0
    %576 = vmatpush.bf16.xpose.msra.mxu0 0
    %577 = vmatpush.bf16.xpose.msra.mxu0 0
    %578 = vmatpush.bf16.xpose.msra.mxu0 0
    %579 = vmatpush.bf16.xpose.msra.mxu0 %v570
    %580 = vmatmul.bf16.gmra.mxu0 %v567
    %v581 = vpop.f32.mrf.mxu0
    %v582 = vadd.f32 0.0, %v581
    %v583 = vpop.f32.mrf.mxu0
    %584 = vdwg.mxu0
    %v585 = vsel %vm138, %v582, -inf
    %v586 = vrot.slane %v585, 4
    %v587 = vmax.f32 %v585, %v586
    %v588 = vrot.slane %v587, 2
    %v589 = vmax.f32 %v587, %v588
    %v590 = vrot.slane %v589, 1
    %v591 = vmax.f32 %v589, %v590
    %v592 = vsub.f32 %v582, %v591
    %v593 = vmul.f32 %v592, 1.442695
    %v594 = vpow.pop %v593
    %v595 = vsel %vm138, %v594, 0.0
    %v596 = vrot.slane %v595, 4
    %v597 = vadd.f32 %v595, %v596
    %v598 = vrot.slane %v597, 2
    %v599 = vadd.f32 %v597, %v598
    %v600 = vrot.slane %v599, 1
    %v601 = vadd.f32 %v599, %v600
    %v602 = vrcp.pop %v601
    %v603 = vmul.f32 %v601, %v602
    %v604 = vsub.f32 1.0, %v603
    %v605 = vmul.f32 %v602, %v604
    %v606 = vadd.f32 %v602, %v605
    %vm607 = vweird.f32 %v601
    %vm608 = vweird.f32 %v602
    %vm609 = vmor %vm607, %vm608
    %v610 = vsel %vm609, %v602, %v606
    %v611 = vand.u32 2147483647, %v601
    %vm612 = vcmp.eq.f32.partialorder %v611, 8.507059e+37
    %v613 = vand.u32 %v601, 2147483648
    %v614 = vor.u32 1.1754944e-38, %v613
    %v615 = vsel %vm612, %v614, %v610
    %v616 = vmul.f32 %v594, %v615
    %v617 = vpack.c.bf16 %v616, %v616
    %618 = vrot.lane.b32.xlu0 %v562, 96
    %v619 = vpop.permute.xlu0 %618
    %v621 = vsel %vm138, %v617, 0
    %v624 = vsel %vm177, %v619, 0
    %626 = vmatpush.bf16.msra.mxu0 0
    %627 = vmatpush.bf16.msra.mxu0 0
    %628 = vmatpush.bf16.msra.mxu0 0
    %629 = vmatpush.bf16.msra.mxu0 0
    %630 = vmatpush.bf16.msra.mxu0 0
    %631 = vmatpush.bf16.msra.mxu0 0
    %632 = vmatpush.bf16.msra.mxu0 0
    %633 = vmatpush.bf16.msra.mxu0 %v624
    %634 = vmatmul.bf16.gmra.mxu0 %v621
    %v635 = vpop.f32.mrf.mxu0
    %v636 = vadd.f32 0.0, %v635
    %v637 = vpop.f32.mrf.mxu0
    %638 = vdwg.mxu0
    %v639 = vpack.c.bf16 %v636, %v636
    %640 = vrot.lane.b32.xlu0 %v562, 124
    %v641 = vpop.permute.xlu0 %640
    %642 = vrot.lane.b32.xlu0 %v562, 108
    %v643 = vpop.permute.xlu0 %642
    %v645 = vsel %vm118, %v641, 0
    %v648 = vsel %vm118, %v643, 0
    %650 = vmatpush.bf16.xpose.msra.mxu0 0
    %651 = vmatpush.bf16.xpose.msra.mxu0 0
    %652 = vmatpush.bf16.xpose.msra.mxu0 0
    %653 = vmatpush.bf16.xpose.msra.mxu0 0
    %654 = vmatpush.bf16.xpose.msra.mxu0 0
    %655 = vmatpush.bf16.xpose.msra.mxu0 0
    %656 = vmatpush.bf16.xpose.msra.mxu0 0
    %657 = vmatpush.bf16.xpose.msra.mxu0 %v648
    %658 = vmatmul.bf16.gmra.mxu0 %v645
    %v659 = vpop.f32.mrf.mxu0
    %v660 = vadd.f32 0.0, %v659
    %v661 = vpop.f32.mrf.mxu0
    %662 = vdwg.mxu0
    %v663 = vsel %vm138, %v660, -inf
    %v664 = vrot.slane %v663, 4
    %v665 = vmax.f32 %v663, %v664
    %v666 = vrot.slane %v665, 2
    %v667 = vmax.f32 %v665, %v666
    %v668 = vrot.slane %v667, 1
    %v669 = vmax.f32 %v667, %v668
    %v670 = vsub.f32 %v660, %v669
    %v671 = vmul.f32 %v670, 1.442695
    %v672 = vpow.pop %v671
    %v673 = vsel %vm138, %v672, 0.0
    %v674 = vrot.slane %v673, 4
    %v675 = vadd.f32 %v673, %v674
    %v676 = vrot.slane %v675, 2
    %v677 = vadd.f32 %v675, %v676
    %v678 = vrot.slane %v677, 1
    %v679 = vadd.f32 %v677, %v678
    %v680 = vrcp.pop %v679
    %v681 = vmul.f32 %v679, %v680
    %v682 = vsub.f32 1.0, %v681
    %v683 = vmul.f32 %v680, %v682
    %v684 = vadd.f32 %v680, %v683
    %vm685 = vweird.f32 %v679
    %vm686 = vweird.f32 %v680
    %vm687 = vmor %vm685, %vm686
    %v688 = vsel %vm687, %v680, %v684
    %v689 = vand.u32 2147483647, %v679
    %vm690 = vcmp.eq.f32.partialorder %v689, 8.507059e+37
    %v691 = vand.u32 %v679, 2147483648
    %v692 = vor.u32 1.1754944e-38, %v691
    %v693 = vsel %vm690, %v692, %v688
    %v694 = vmul.f32 %v672, %v693
    %v695 = vpack.c.bf16 %v694, %v694
    %696 = vrot.lane.b32.xlu0 %v562, 92
    %v697 = vpop.permute.xlu0 %696
    %v699 = vsel %vm138, %v695, 0
    %v702 = vsel %vm177, %v697, 0
    %704 = vmatpush.bf16.msra.mxu0 0
    %705 = vmatpush.bf16.msra.mxu0 0
    %706 = vmatpush.bf16.msra.mxu0 0
    %707 = vmatpush.bf16.msra.mxu0 0
    %708 = vmatpush.bf16.msra.mxu0 0
    %709 = vmatpush.bf16.msra.mxu0 0
    %710 = vmatpush.bf16.msra.mxu0 0
    %711 = vmatpush.bf16.msra.mxu0 %v702
    %712 = vmatmul.bf16.gmra.mxu0 %v699
    %v713 = vpop.f32.mrf.mxu0
    %v714 = vadd.f32 0.0, %v713
    %v715 = vpop.f32.mrf.mxu0
    %716 = vdwg.mxu0
    %v717 = vpack.c.bf16 %v714, %v714
    %v719 = vsel %vm118, %v717, 0
    %721 = vmatpush.bf16.msra.mxu0 0
    %722 = vmatpush.bf16.msra.mxu0 0
    %723 = vmatpush.bf16.msra.mxu0 0
    %724 = vmatpush.bf16.msra.mxu0 0
    %725 = vmatpush.bf16.msra.mxu0 0
    %726 = vmatpush.bf16.msra.mxu0 0
    %727 = vmatpush.bf16.msra.mxu0 0
    %728 = vmatpush.bf16.msra.mxu0 %v281
    %729 = vmatmul.bf16.gmra.mxu0 %v719
    %v730 = vpop.f32.mrf.mxu0
    %v731 = vadd.f32 0.0, %v730
    %v732 = vpop.f32.mrf.mxu0
    %733 = vdwg.mxu0
    %v735 = vsel %vm118, %v639, 0
    %737 = vmatpush.bf16.msra.mxu0 0
    %738 = vmatpush.bf16.msra.mxu0 0
    %739 = vmatpush.bf16.msra.mxu0 0
    %740 = vmatpush.bf16.msra.mxu0 0
    %741 = vmatpush.bf16.msra.mxu0 0
    %742 = vmatpush.bf16.msra.mxu0 0
    %743 = vmatpush.bf16.msra.mxu0 0
    %744 = vmatpush.bf16.msra.mxu0 %v300
    %745 = vmatmul.bf16.gmra.mxu0 %v735
    %v746 = vpop.f32.mrf.mxu0
    %v747 = vadd.f32 %v731, %v746
    %v748 = vpop.f32.mrf.mxu0
    %749 = vdwg.mxu0
    %750 = vrot.lane.b32.xlu0 %v562, 120
    %v751 = vpop.permute.xlu0 %750
    %752 = vrot.lane.b32.xlu0 %v562, 104
    %v753 = vpop.permute.xlu0 %752
    %v755 = vsel %vm118, %v751, 0
    %v758 = vsel %vm118, %v753, 0
    %760 = vmatpush.bf16.xpose.msra.mxu0 0
    %761 = vmatpush.bf16.xpose.msra.mxu0 0
    %762 = vmatpush.bf16.xpose.msra.mxu0 0
    %763 = vmatpush.bf16.xpose.msra.mxu0 0
    %764 = vmatpush.bf16.xpose.msra.mxu0 0
    %765 = vmatpush.bf16.xpose.msra.mxu0 0
    %766 = vmatpush.bf16.xpose.msra.mxu0 0
    %767 = vmatpush.bf16.xpose.msra.mxu0 %v758
    %768 = vmatmul.bf16.gmra.mxu0 %v755
    %v769 = vpop.f32.mrf.mxu0
    %v770 = vadd.f32 0.0, %v769
    %v771 = vpop.f32.mrf.mxu0
    %772 = vdwg.mxu0
    %v773 = vsel %vm138, %v770, -inf
    %v774 = vrot.slane %v773, 4
    %v775 = vmax.f32 %v773, %v774
    %v776 = vrot.slane %v775, 2
    %v777 = vmax.f32 %v775, %v776
    %v778 = vrot.slane %v777, 1
    %v779 = vmax.f32 %v777, %v778
    %v780 = vsub.f32 %v770, %v779
    %v781 = vmul.f32 %v780, 1.442695
    %v782 = vpow.pop %v781
    %v783 = vsel %vm138, %v782, 0.0
    %v784 = vrot.slane %v783, 4
    %v785 = vadd.f32 %v783, %v784
    %v786 = vrot.slane %v785, 2
    %v787 = vadd.f32 %v785, %v786
    %v788 = vrot.slane %v787, 1
    %v789 = vadd.f32 %v787, %v788
    %v790 = vrcp.pop %v789
    %v791 = vmul.f32 %v789, %v790
    %v792 = vsub.f32 1.0, %v791
    %v793 = vmul.f32 %v790, %v792
    %v794 = vadd.f32 %v790, %v793
    %vm795 = vweird.f32 %v789
    %vm796 = vweird.f32 %v790
    %vm797 = vmor %vm795, %vm796
    %v798 = vsel %vm797, %v790, %v794
    %v799 = vand.u32 2147483647, %v789
    %vm800 = vcmp.eq.f32.partialorder %v799, 8.507059e+37
    %v801 = vand.u32 %v789, 2147483648
    %v802 = vor.u32 1.1754944e-38, %v801
    %v803 = vsel %vm800, %v802, %v798
    %v804 = vmul.f32 %v782, %v803
    %v805 = vpack.c.bf16 %v804, %v804
    %806 = vrot.lane.b32.xlu0 %v562, 88
    %v807 = vpop.permute.xlu0 %806
    %v809 = vsel %vm138, %v805, 0
    %v812 = vsel %vm177, %v807, 0
    %814 = vmatpush.bf16.msra.mxu0 0
    %815 = vmatpush.bf16.msra.mxu0 0
    %816 = vmatpush.bf16.msra.mxu0 0
    %817 = vmatpush.bf16.msra.mxu0 0
    %818 = vmatpush.bf16.msra.mxu0 0
    %819 = vmatpush.bf16.msra.mxu0 0
    %820 = vmatpush.bf16.msra.mxu0 0
    %821 = vmatpush.bf16.msra.mxu0 %v812
    %822 = vmatmul.bf16.gmra.mxu0 %v809
    %v823 = vpop.f32.mrf.mxu0
    %v824 = vadd.f32 0.0, %v823
    %v825 = vpop.f32.mrf.mxu0
    %826 = vdwg.mxu0
    %v827 = vpack.c.bf16 %v824, %v824
    %v829 = vsel %vm118, %v827, 0
    %831 = vmatpush.bf16.msra.mxu0 0
    %832 = vmatpush.bf16.msra.mxu0 0
    %833 = vmatpush.bf16.msra.mxu0 0
    %834 = vmatpush.bf16.msra.mxu0 0
    %835 = vmatpush.bf16.msra.mxu0 0
    %836 = vmatpush.bf16.msra.mxu0 0
    %837 = vmatpush.bf16.msra.mxu0 0
    %838 = vmatpush.bf16.msra.mxu0 %v399
    %839 = vmatmul.bf16.gmra.mxu0 %v829
    %v840 = vpop.f32.mrf.mxu0
    %v841 = vadd.f32 0.0, %v840
    %v842 = vpop.f32.mrf.mxu0
    %843 = vdwg.mxu0
    %v844 = vadd.f32 %v747, %v841
    %845 = vrot.lane.b32.xlu0 %v562, 116
    %v846 = vpop.permute.xlu0 %845
    %847 = vrot.lane.b32.xlu0 %v562, 100
    %v848 = vpop.permute.xlu0 %847
    %v850 = vsel %vm118, %v846, 0
    %v853 = vsel %vm118, %v848, 0
    %855 = vmatpush.bf16.xpose.msra.mxu0 0
    %856 = vmatpush.bf16.xpose.msra.mxu0 0
    %857 = vmatpush.bf16.xpose.msra.mxu0 0
    %858 = vmatpush.bf16.xpose.msra.mxu0 0
    %859 = vmatpush.bf16.xpose.msra.mxu0 0
    %860 = vmatpush.bf16.xpose.msra.mxu0 0
    %861 = vmatpush.bf16.xpose.msra.mxu0 0
    %862 = vmatpush.bf16.xpose.msra.mxu0 %v853
    %863 = vmatmul.bf16.gmra.mxu0 %v850
    %v864 = vpop.f32.mrf.mxu0
    %v865 = vadd.f32 0.0, %v864
    %v866 = vpop.f32.mrf.mxu0
    %867 = vdwg.mxu0
    %v868 = vsel %vm138, %v865, -inf
    %v869 = vrot.slane %v868, 4
    %v870 = vmax.f32 %v868, %v869
    %v871 = vrot.slane %v870, 2
    %v872 = vmax.f32 %v870, %v871
    %v873 = vrot.slane %v872, 1
    %v874 = vmax.f32 %v872, %v873
    %v875 = vsub.f32 %v865, %v874
    %v876 = vmul.f32 %v875, 1.442695
    %v877 = vpow.pop %v876
    %v878 = vsel %vm138, %v877, 0.0
    %v879 = vrot.slane %v878, 4
    %v880 = vadd.f32 %v878, %v879
    %v881 = vrot.slane %v880, 2
    %v882 = vadd.f32 %v880, %v881
    %v883 = vrot.slane %v882, 1
    %v884 = vadd.f32 %v882, %v883
    %v885 = vrcp.pop %v884
    %v886 = vmul.f32 %v884, %v885
    %v887 = vsub.f32 1.0, %v886
    %v888 = vmul.f32 %v885, %v887
    %v889 = vadd.f32 %v885, %v888
    %vm890 = vweird.f32 %v884
    %vm891 = vweird.f32 %v885
    %vm892 = vmor %vm890, %vm891
    %v893 = vsel %vm892, %v885, %v889
    %v894 = vand.u32 2147483647, %v884
    %vm895 = vcmp.eq.f32.partialorder %v894, 8.507059e+37
    %v896 = vand.u32 %v884, 2147483648
    %v897 = vor.u32 1.1754944e-38, %v896
    %v898 = vsel %vm895, %v897, %v893
    %v899 = vmul.f32 %v877, %v898
    %v900 = vpack.c.bf16 %v899, %v899
    %901 = vrot.lane.b32.xlu0 %v562, 84
    %v902 = vpop.permute.xlu0 %901
    %v904 = vsel %vm138, %v900, 0
    %v907 = vsel %vm177, %v902, 0
    %909 = vmatpush.bf16.msra.mxu0 0
    %910 = vmatpush.bf16.msra.mxu0 0
    %911 = vmatpush.bf16.msra.mxu0 0
    %912 = vmatpush.bf16.msra.mxu0 0
    %913 = vmatpush.bf16.msra.mxu0 0
    %914 = vmatpush.bf16.msra.mxu0 0
    %915 = vmatpush.bf16.msra.mxu0 0
    %916 = vmatpush.bf16.msra.mxu0 %v907
    %917 = vmatmul.bf16.gmra.mxu0 %v904
    %v918 = vpop.f32.mrf.mxu0
    %v919 = vadd.f32 0.0, %v918
    %v920 = vpop.f32.mrf.mxu0
    %921 = vdwg.mxu0
    %v922 = vpack.c.bf16 %v919, %v919
    %v924 = vsel %vm118, %v922, 0
    %926 = vmatpush.bf16.msra.mxu0 0
    %927 = vmatpush.bf16.msra.mxu0 0
    %928 = vmatpush.bf16.msra.mxu0 0
    %929 = vmatpush.bf16.msra.mxu0 0
    %930 = vmatpush.bf16.msra.mxu0 0
    %931 = vmatpush.bf16.msra.mxu0 0
    %932 = vmatpush.bf16.msra.mxu0 0
    %933 = vmatpush.bf16.msra.mxu0 %v499
    %934 = vmatmul.bf16.gmra.mxu0 %v924
    %v935 = vpop.f32.mrf.mxu0
    %v936 = vadd.f32 0.0, %v935
    %v937 = vpop.f32.mrf.mxu0
    %938 = vdwg.mxu0
    %v939 = vadd.f32 %v844, %v936
    %v940 = vadd.f32 %v939, %v517
    %v942 = vrot.slane %v940, 1
    %943 = vrot.lane.b32.xlu0 %v942, 16
    %v944 = vpop.permute.xlu0 %943
    %v946 = vrot.slane %v940, 2
    %947 = vrot.lane.b32.xlu0 %v946, 32
    %v948 = vpop.permute.xlu0 %947
    %v950 = vrot.slane %v940, 3
    %951 = vrot.lane.b32.xlu0 %v950, 48
    %v952 = vpop.permute.xlu0 %951
    %v954 = vrot.slane %v940, 4
    %955 = vrot.lane.b32.xlu0 %v954, 64
    %v956 = vpop.permute.xlu0 %955
    %v958 = vrot.slane %v940, 5
    %959 = vrot.lane.b32.xlu0 %v958, 80
    %v960 = vpop.permute.xlu0 %959
    %v962 = vrot.slane %v940, 6
    %963 = vrot.lane.b32.xlu0 %v962, 96
    %v964 = vpop.permute.xlu0 %963
    %v966 = vrot.slane %v940, 7
    %967 = vrot.lane.b32.xlu0 %v966, 112
    %v968 = vpop.permute.xlu0 %967
    %v970 = vsel %vm549, %v940, %v944
    %v971 = vsel %vm96, %v970, %v948
    %v972 = vsel %vm552, %v971, %v952
    %v973 = vsel %vm554, %v972, %v956
    %v974 = vsel %vm556, %v973, %v960
    %v975 = vsel %vm558, %v974, %v964
    %v976 = vsel %vm560, %v975, %v968
    %v978 = vrot.slane %v976, 7
    %vm980 = vcmask 1040384
    %v981 = vsel %vm980, %v561, %v978
    %982 = vst [vmem:[#allocation8] sm:$0x3] %v981
    // Predicated region
    $region34: #{tpu_custom_call.1} parent=1 // pred_check
      _
    $region35: #{tpu_custom_call.1} parent=1 // pred_check_branch
      %984 = sbr.rel (0) target = $region37
    $region36: #{tpu_custom_call.1} parent=1 // pred_region
      %986 = vsyncadd [#allocation4], 0
      %s988 = sshll.u32 [#allocation8], 4
      %s989 = int_to_ptr.vmem [resolvable:$true] %s988
      %s990 = sshll.u32 %s5, 4
      %s991 = int_to_ptr.hbm [resolvable:$true] %s990
      %993 = dma.vmem_to_hbm [thread:$0]  %s989, 32, %s991, [#allocation4]
    $region37: #{tpu_custom_call.1} parent=1 // pred_fallthru
      _
    // Predicated region
    $region38: #{tpu_custom_call.1} parent=1 // pred_check
      _
    $region39: #{tpu_custom_call.1} parent=1 // pred_check_branch
      %995 = sbr.rel (0) target = $region41
    $region40: #{tpu_custom_call.1} parent=1 // pred_region
      %997 = dma.done [#allocation4], 32
    $region41: #{tpu_custom_call.1} parent=1 // pred_fallthru
      _
    %998 = vsyncpa [#allocation3], 1
    %999 = vsyncpa [#allocation6], 1
    %1000 = vsyncpa [#allocation4], 1

</llo_original>
